<compile_context>
chip_gen: v7x
topology: tpu7x:2x2x1
jax: 0.10.0
libtpu: 0.0.40
codegen_flags: <defaults>
</compile_context>

<pallas_src>
import math
import jax
import jax.numpy as jnp
from jax.experimental import pallas as pl
from jax.experimental.pallas import tpu as pltpu

# ----------------------------- config (small) -------------------------------
VOCAB = 100
D_MODEL = 128          # heads * d_v must equal d_model for the residual add
HEADS = 4
D_V = 32
HIDDEN = 256
NUM_ENCODER = 2
BATCH = 2
SEQ = 8
EPS = 1e-5

VEC_W = max(D_MODEL, HIDDEN)                      # packed-vector row width
VOCAB_PAD = ((VOCAB + 127) // 128) * 128          # pad vocab for aligned one-hot matmul


# ------------------------------ Pallas kernel -------------------------------
def _fused_encoder_kernel(ids_ref, emb_ref, pe_ref, *rest):
    """rest = [wv_t, w1_t, w2_t, vecs] * NUM_ENCODER, then o_ref."""
    o_ref = rest[-1]
    blk_refs = rest[:-1]
    num_blocks = len(blk_refs) // 4

    n = ids_ref.shape[0]
    vpad = emb_ref.shape[0]

    # ---- embedding lookup as a one-hot matmul (no dynamic gather) ----
    ids = ids_ref[...]                                          # (N, 1) int32
    iota = jax.lax.broadcasted_iota(jnp.int32, (n, vpad), 1)    # (N, VOCAB_PAD)
    onehot = (iota == ids).astype(jnp.float32)
    x = jnp.dot(onehot, emb_ref[...], preferred_element_type=jnp.float32)
    x = x + pe_ref[...]                                         # (N, D) f32

    for b in range(num_blocks):
        wv_ref, w1_ref, w2_ref, vec_ref = blk_refs[4 * b: 4 * b + 4]
        d = wv_ref.shape[1]
        hdim = w1_ref.shape[1]

        # packed per-block vectors: rows = bv, g1, be1, b1, b2, g2, be2
        bv  = vec_ref[0:1, :d]
        g1  = vec_ref[1:2, :d]
        be1 = vec_ref[2:3, :d]
        b1  = vec_ref[3:4, :hdim]
        b2  = vec_ref[4:5, :d]
        g2  = vec_ref[5:6, :d]
        be2 = vec_ref[6:7, :d]

        # --- MultiHeadAttention == w_v(X) (SelfAttention returns V) ---
        v = jnp.dot(x.astype(jnp.bfloat16), wv_ref[...],
                    preferred_element_type=jnp.float32) + bv

        # --- residual + LayerNorm 1 (one-pass stats, f32) ---
        h = x + v
        mu = jnp.mean(h, axis=-1, keepdims=True)
        var = jnp.mean(h * h, axis=-1, keepdims=True) - mu * mu
        h1 = (h - mu) * jax.lax.rsqrt(var + EPS) * g1 + be1

        # --- FFN: fc2(dropout(relu(fc1(x)))), dropout = identity at inference ---
        f = jnp.dot(h1.astype(jnp.bfloat16), w1_ref[...],
                    preferred_element_type=jnp.float32) + b1
        f = jnp.maximum(f, 0.0)
        f = jnp.dot(f.astype(jnp.bfloat16), w2_ref[...],
                    preferred_element_type=jnp.float32) + b2

        # --- residual + LayerNorm 2 ---
        h2 = h1 + f
        mu2 = jnp.mean(h2, axis=-1, keepdims=True)
        var2 = jnp.mean(h2 * h2, axis=-1, keepdims=True) - mu2 * mu2
        x = (h2 - mu2) * jax.lax.rsqrt(var2 + EPS) * g2 + be2

    o_ref[...] = x.astype(o_ref.dtype)


def encoder_forward(tokens, params):
    """tokens: (B, S) int32 -> (B, S, D_MODEL) f32; one fused pallas_call."""
    B, S = tokens.shape
    N = B * S
    ids2d = tokens.reshape(N, 1).astype(jnp.int32)

    block_args = []
    for blk in params["blocks"]:
        block_args += [blk["wv_t"], blk["w1_t"], blk["w2_t"], blk["vecs"]]

    n_in = 3 + 4 * len(params["blocks"])
    vmem = lambda: pl.BlockSpec(memory_space=pltpu.MemorySpace.VMEM)

    out2d = pl.pallas_call(
        _fused_encoder_kernel,
        out_shape=jax.ShapeDtypeStruct((N, D_MODEL), jnp.float32),
        in_specs=[vmem() for _ in range(n_in)],
        out_specs=vmem(),
    )(ids2d, params["emb_pad"], params["pe_rows"], *block_args)

    return out2d.reshape(B, S, D_MODEL)


# ------------------------------ init / tables --------------------------------
def position_embedding(seq_len, d_model):
    # Reproduce the reference exactly: divisor = 10000 ** (2*i/d_model) for all i.
    i = jnp.arange(d_model, dtype=jnp.float32)
    pos = jnp.arange(seq_len, dtype=jnp.float32)[:, None]
    div = jnp.power(10000.0, 2.0 * i / float(d_model))[None, :]
    angle = pos / div
    even = (jnp.arange(d_model) % 2 == 0)[None, :]
    return jnp.where(even, jnp.sin(angle), jnp.cos(angle))


def init_params(key):
    ks = jax.random.split(key, 1 + NUM_ENCODER)
    emb = jax.random.normal(ks[0], (VOCAB, D_MODEL), jnp.float32)
    emb_pad = jnp.zeros((VOCAB_PAD, D_MODEL), jnp.float32).at[:VOCAB].set(emb)

    # position embedding: constant table, computed once (tiled over batch rows)
    pe = position_embedding(SEQ, D_MODEL)
    pe_rows = jnp.tile(pe, (BATCH, 1))                       # (B*S, D)

    blocks = []
    for b in range(NUM_ENCODER):
        kb = jax.random.split(ks[1 + b], 6)
        lim_d = 1.0 / math.sqrt(D_MODEL)
        lim_h = 1.0 / math.sqrt(HIDDEN)
        # nn.Linear stores (out, in); pre-transpose so kernel does x @ W^T.
        wv = jax.random.uniform(kb[0], (HEADS * D_V, D_MODEL), jnp.float32, -lim_d, lim_d)
        bv = jax.random.uniform(kb[1], (HEADS * D_V,), jnp.float32, -lim_d, lim_d)
        w1 = jax.random.uniform(kb[2], (HIDDEN, D_MODEL), jnp.float32, -lim_d, lim_d)
        b1 = jax.random.uniform(kb[3], (HIDDEN,), jnp.float32, -lim_d, lim_d)
        w2 = jax.random.uniform(kb[4], (D_MODEL, HIDDEN), jnp.float32, -lim_h, lim_h)
        b2 = jax.random.uniform(kb[5], (D_MODEL,), jnp.float32, -lim_h, lim_h)

        # pack the 7 small vectors into a single (8, VEC_W) f32 block (1 DMA)
        vecs = jnp.zeros((8, VEC_W), jnp.float32)
        vecs = vecs.at[0, :D_MODEL].set(bv)
        vecs = vecs.at[1, :D_MODEL].set(jnp.ones((D_MODEL,), jnp.float32))   # ln1 gamma
        vecs = vecs.at[2, :D_MODEL].set(jnp.zeros((D_MODEL,), jnp.float32))  # ln1 beta
        vecs = vecs.at[3, :HIDDEN].set(b1)
        vecs = vecs.at[4, :D_MODEL].set(b2)
        vecs = vecs.at[5, :D_MODEL].set(jnp.ones((D_MODEL,), jnp.float32))   # ln2 gamma
        vecs = vecs.at[6, :D_MODEL].set(jnp.zeros((D_MODEL,), jnp.float32))  # ln2 beta

        blocks.append(dict(
            wv_t=wv.T.astype(jnp.bfloat16),     # bf16 weights, f32 accumulate in-kernel
            w1_t=w1.T.astype(jnp.bfloat16),
            w2_t=w2.T.astype(jnp.bfloat16),
            vecs=vecs,
        ))
    return dict(emb=emb, emb_pad=emb_pad, pe_rows=pe_rows, blocks=blocks)


# ------------------- pure-JAX reference (same numerics) ----------------------
def _ln_ref(h, g, b):
    mu = jnp.mean(h, axis=-1, keepdims=True)
    var = jnp.mean((h - mu) ** 2, axis=-1, keepdims=True)
    return (h - mu) * jax.lax.rsqrt(var + EPS) * g + b


def encoder_forward_ref(tokens, params):
    B, S = tokens.shape
    x = params["emb"][tokens.reshape(-1)] + params["pe_rows"]
    for blk in params["blocks"]:
        vecs = blk["vecs"]
        bv, g1, be1 = vecs[0:1, :D_MODEL], vecs[1:2, :D_MODEL], vecs[2:3, :D_MODEL]
        b1 = vecs[3:4, :HIDDEN]
        b2, g2, be2 = vecs[4:5, :D_MODEL], vecs[5:6, :D_MODEL], vecs[6:7, :D_MODEL]
        v = jnp.dot(x.astype(jnp.bfloat16), blk["wv_t"],
                    preferred_element_type=jnp.float32) + bv
        h1 = _ln_ref(x + v, g1, be1)
        f = jnp.maximum(jnp.dot(h1.astype(jnp.bfloat16), blk["w1_t"],
                                preferred_element_type=jnp.float32) + b1, 0.0)
        f = jnp.dot(f.astype(jnp.bfloat16), blk["w2_t"],
                    preferred_element_type=jnp.float32) + b2
        x = _ln_ref(h1 + f, g2, be2)
    return x.reshape(B, S, D_MODEL)


if __name__ == "__main__":
    key = jax.random.PRNGKey(0)
    k_tok, k_par = jax.random.split(key)
    tokens = jax.random.randint(k_tok, (BATCH, SEQ), 0, VOCAB, dtype=jnp.int32)
    params = init_params(k_par)

    fwd = jax.jit(encoder_forward)
    out = jax.block_until_ready(fwd(tokens, params))
    assert out.shape == (BATCH, SEQ, D_MODEL)

    ref = encoder_forward_ref(tokens, params)
    err = float(jnp.max(jnp.abs(out - ref)))
    assert err < 1e-3, f"max abs err {err}"

    print("KERNEL_OK")
</pallas_src>

<mosaic_0001>
module attributes {stable_mosaic.version = 11 : i64} {
  func.func @_fused_encoder_kernel(%arg0: memref<16x1xi32, #tpu.memory_space<vmem>>, %arg1: memref<128x128xf32, #tpu.memory_space<vmem>>, %arg2: memref<16x128xf32, #tpu.memory_space<vmem>>, %arg3: memref<128x128xbf16, #tpu.memory_space<vmem>>, %arg4: memref<128x256xbf16, #tpu.memory_space<vmem>>, %arg5: memref<256x128xbf16, #tpu.memory_space<vmem>>, %arg6: memref<8x256xf32, #tpu.memory_space<vmem>>, %arg7: memref<128x128xbf16, #tpu.memory_space<vmem>>, %arg8: memref<128x256xbf16, #tpu.memory_space<vmem>>, %arg9: memref<256x128xbf16, #tpu.memory_space<vmem>>, %arg10: memref<8x256xf32, #tpu.memory_space<vmem>>, %arg11: memref<16x128xf32, #tpu.memory_space<vmem>>) attributes {dimension_semantics = [], scalar_prefetch = 0 : i64, scratch_operands = 0 : i64, tpu.core_type = #tpu.core_type<tc>} {
    %c0 = arith.constant 0 : index
    %c0_0 = arith.constant 0 : index
    %0 = vector.load %arg0[%c0, %c0_0] : memref<16x1xi32, #tpu.memory_space<vmem>>, vector<16x1xi32>
    %1 = tpu.iota {dimensions = array<i32: 1>} : vector<16x128xi32>
    %2 = vector.broadcast %0 : vector<16x1xi32> to vector<16x128xi32>
    %3 = arith.cmpi eq, %1, %2 : vector<16x128xi32>
    %4 = arith.extui %3 : vector<16x128xi1> to vector<16x128xi32>
    %5 = arith.sitofp %4 : vector<16x128xi32> to vector<16x128xf32>
    %c0_1 = arith.constant 0 : index
    %c0_2 = arith.constant 0 : index
    %6 = vector.load %arg1[%c0_1, %c0_2] : memref<128x128xf32, #tpu.memory_space<vmem>>, vector<128x128xf32>
    %cst = arith.constant dense<0.000000e+00> : vector<16x128xf32>
    %7 = tpu.matmul %5, %6, %cst {dimension_numbers = #tpu.dot_dimension_numbers<[1], [0], [0], [1], [0, 0, 1, 1], [], []>} : vector<16x128xf32>, vector<128x128xf32>, vector<16x128xf32> -> vector<16x128xf32>
    %c0_3 = arith.constant 0 : index
    %c0_4 = arith.constant 0 : index
    %8 = vector.load %arg2[%c0_3, %c0_4] : memref<16x128xf32, #tpu.memory_space<vmem>>, vector<16x128xf32>
    %9 = arith.addf %7, %8 : vector<16x128xf32>
    %c0_5 = arith.constant 0 : index
    %c0_6 = arith.constant 0 : index
    %10 = vector.load %arg6[%c0_5, %c0_6] : memref<8x256xf32, #tpu.memory_space<vmem>>, vector<1x128xf32>
    %c1 = arith.constant 1 : index
    %c0_7 = arith.constant 0 : index
    %11 = vector.load %arg6[%c1, %c0_7] : memref<8x256xf32, #tpu.memory_space<vmem>>, vector<1x128xf32>
    %c2 = arith.constant 2 : index
    %c0_8 = arith.constant 0 : index
    %12 = vector.load %arg6[%c2, %c0_8] : memref<8x256xf32, #tpu.memory_space<vmem>>, vector<1x128xf32>
    %c3 = arith.constant 3 : index
    %c0_9 = arith.constant 0 : index
    %13 = vector.load %arg6[%c3, %c0_9] : memref<8x256xf32, #tpu.memory_space<vmem>>, vector<1x256xf32>
    %c4 = arith.constant 4 : index
    %c0_10 = arith.constant 0 : index
    %14 = vector.load %arg6[%c4, %c0_10] : memref<8x256xf32, #tpu.memory_space<vmem>>, vector<1x128xf32>
    %c5 = arith.constant 5 : index
    %c0_11 = arith.constant 0 : index
    %15 = vector.load %arg6[%c5, %c0_11] : memref<8x256xf32, #tpu.memory_space<vmem>>, vector<1x128xf32>
    %c6 = arith.constant 6 : index
    %c0_12 = arith.constant 0 : index
    %16 = vector.load %arg6[%c6, %c0_12] : memref<8x256xf32, #tpu.memory_space<vmem>>, vector<1x128xf32>
    %17 = arith.truncf %9 : vector<16x128xf32> to vector<16x128xbf16>
    %c0_13 = arith.constant 0 : index
    %c0_14 = arith.constant 0 : index
    %18 = vector.load %arg3[%c0_13, %c0_14] : memref<128x128xbf16, #tpu.memory_space<vmem>>, vector<128x128xbf16>
    %cst_15 = arith.constant dense<0.000000e+00> : vector<16x128xf32>
    %19 = tpu.matmul %17, %18, %cst_15 {dimension_numbers = #tpu.dot_dimension_numbers<[1], [0], [0], [1], [0, 0, 1, 1], [], []>} : vector<16x128xbf16>, vector<128x128xbf16>, vector<16x128xf32> -> vector<16x128xf32>
    %20 = vector.broadcast %10 : vector<1x128xf32> to vector<16x128xf32>
    %21 = arith.addf %19, %20 : vector<16x128xf32>
    %22 = arith.addf %9, %21 : vector<16x128xf32>
    %cst_16 = arith.constant dense<0.000000e+00> : vector<16xf32>
    %23 = vector.multi_reduction <add>, %22, %cst_16 [1] : vector<16x128xf32> to vector<16xf32>
    %24 = vector.shape_cast %23 : vector<16xf32> to vector<16x1xf32>
    %cst_17 = arith.constant 1.280000e+02 : f32
    %25 = vector.broadcast %cst_17 : f32 to vector<16x1xf32>
    %26 = arith.divf %24, %25 : vector<16x1xf32>
    %27 = arith.mulf %22, %22 : vector<16x128xf32>
    %cst_18 = arith.constant dense<0.000000e+00> : vector<16xf32>
    %28 = vector.multi_reduction <add>, %27, %cst_18 [1] : vector<16x128xf32> to vector<16xf32>
    %29 = vector.shape_cast %28 : vector<16xf32> to vector<16x1xf32>
    %cst_19 = arith.constant 1.280000e+02 : f32
    %30 = vector.broadcast %cst_19 : f32 to vector<16x1xf32>
    %31 = arith.divf %29, %30 : vector<16x1xf32>
    %32 = arith.mulf %26, %26 : vector<16x1xf32>
    %33 = arith.subf %31, %32 : vector<16x1xf32>
    %34 = vector.broadcast %26 : vector<16x1xf32> to vector<16x128xf32>
    %35 = arith.subf %22, %34 : vector<16x128xf32>
    %cst_20 = arith.constant 9.99999974E-6 : f32
    %36 = vector.broadcast %cst_20 : f32 to vector<16x1xf32>
    %37 = arith.addf %33, %36 : vector<16x1xf32>
    %38 = math.rsqrt %37 : vector<16x1xf32>
    %39 = vector.broadcast %38 : vector<16x1xf32> to vector<16x128xf32>
    %40 = arith.mulf %35, %39 : vector<16x128xf32>
    %41 = vector.broadcast %11 : vector<1x128xf32> to vector<16x128xf32>
    %42 = arith.mulf %40, %41 : vector<16x128xf32>
    %43 = vector.broadcast %12 : vector<1x128xf32> to vector<16x128xf32>
    %44 = arith.addf %42, %43 : vector<16x128xf32>
    %45 = arith.truncf %44 : vector<16x128xf32> to vector<16x128xbf16>
    %c0_21 = arith.constant 0 : index
    %c0_22 = arith.constant 0 : index
    %46 = vector.load %arg4[%c0_21, %c0_22] : memref<128x256xbf16, #tpu.memory_space<vmem>>, vector<128x256xbf16>
    %cst_23 = arith.constant dense<0.000000e+00> : vector<16x256xf32>
    %47 = tpu.matmul %45, %46, %cst_23 {dimension_numbers = #tpu.dot_dimension_numbers<[1], [0], [0], [1], [0, 0, 1, 1], [], []>} : vector<16x128xbf16>, vector<128x256xbf16>, vector<16x256xf32> -> vector<16x256xf32>
    %48 = vector.broadcast %13 : vector<1x256xf32> to vector<16x256xf32>
    %49 = arith.addf %47, %48 : vector<16x256xf32>
    %cst_24 = arith.constant 0.000000e+00 : f32
    %50 = vector.broadcast %cst_24 : f32 to vector<16x256xf32>
    %51 = arith.maximumf %49, %50 : vector<16x256xf32>
    %52 = arith.truncf %51 : vector<16x256xf32> to vector<16x256xbf16>
    %c0_25 = arith.constant 0 : index
    %c0_26 = arith.constant 0 : index
    %53 = vector.load %arg5[%c0_25, %c0_26] : memref<256x128xbf16, #tpu.memory_space<vmem>>, vector<256x128xbf16>
    %cst_27 = arith.constant dense<0.000000e+00> : vector<16x128xf32>
    %54 = tpu.matmul %52, %53, %cst_27 {dimension_numbers = #tpu.dot_dimension_numbers<[1], [0], [0], [1], [0, 0, 1, 1], [], []>} : vector<16x256xbf16>, vector<256x128xbf16>, vector<16x128xf32> -> vector<16x128xf32>
    %55 = vector.broadcast %14 : vector<1x128xf32> to vector<16x128xf32>
    %56 = arith.addf %54, %55 : vector<16x128xf32>
    %57 = arith.addf %44, %56 : vector<16x128xf32>
    %cst_28 = arith.constant dense<0.000000e+00> : vector<16xf32>
    %58 = vector.multi_reduction <add>, %57, %cst_28 [1] : vector<16x128xf32> to vector<16xf32>
    %59 = vector.shape_cast %58 : vector<16xf32> to vector<16x1xf32>
    %cst_29 = arith.constant 1.280000e+02 : f32
    %60 = vector.broadcast %cst_29 : f32 to vector<16x1xf32>
    %61 = arith.divf %59, %60 : vector<16x1xf32>
    %62 = arith.mulf %57, %57 : vector<16x128xf32>
    %cst_30 = arith.constant dense<0.000000e+00> : vector<16xf32>
    %63 = vector.multi_reduction <add>, %62, %cst_30 [1] : vector<16x128xf32> to vector<16xf32>
    %64 = vector.shape_cast %63 : vector<16xf32> to vector<16x1xf32>
    %cst_31 = arith.constant 1.280000e+02 : f32
    %65 = vector.broadcast %cst_31 : f32 to vector<16x1xf32>
    %66 = arith.divf %64, %65 : vector<16x1xf32>
    %67 = arith.mulf %61, %61 : vector<16x1xf32>
    %68 = arith.subf %66, %67 : vector<16x1xf32>
    %69 = vector.broadcast %61 : vector<16x1xf32> to vector<16x128xf32>
    %70 = arith.subf %57, %69 : vector<16x128xf32>
    %cst_32 = arith.constant 9.99999974E-6 : f32
    %71 = vector.broadcast %cst_32 : f32 to vector<16x1xf32>
    %72 = arith.addf %68, %71 : vector<16x1xf32>
    %73 = math.rsqrt %72 : vector<16x1xf32>
    %74 = vector.broadcast %73 : vector<16x1xf32> to vector<16x128xf32>
    %75 = arith.mulf %70, %74 : vector<16x128xf32>
    %76 = vector.broadcast %15 : vector<1x128xf32> to vector<16x128xf32>
    %77 = arith.mulf %75, %76 : vector<16x128xf32>
    %78 = vector.broadcast %16 : vector<1x128xf32> to vector<16x128xf32>
    %79 = arith.addf %77, %78 : vector<16x128xf32>
    %c0_33 = arith.constant 0 : index
    %c0_34 = arith.constant 0 : index
    %80 = vector.load %arg10[%c0_33, %c0_34] : memref<8x256xf32, #tpu.memory_space<vmem>>, vector<1x128xf32>
    %c1_35 = arith.constant 1 : index
    %c0_36 = arith.constant 0 : index
    %81 = vector.load %arg10[%c1_35, %c0_36] : memref<8x256xf32, #tpu.memory_space<vmem>>, vector<1x128xf32>
    %c2_37 = arith.constant 2 : index
    %c0_38 = arith.constant 0 : index
    %82 = vector.load %arg10[%c2_37, %c0_38] : memref<8x256xf32, #tpu.memory_space<vmem>>, vector<1x128xf32>
    %c3_39 = arith.constant 3 : index
    %c0_40 = arith.constant 0 : index
    %83 = vector.load %arg10[%c3_39, %c0_40] : memref<8x256xf32, #tpu.memory_space<vmem>>, vector<1x256xf32>
    %c4_41 = arith.constant 4 : index
    %c0_42 = arith.constant 0 : index
    %84 = vector.load %arg10[%c4_41, %c0_42] : memref<8x256xf32, #tpu.memory_space<vmem>>, vector<1x128xf32>
    %c5_43 = arith.constant 5 : index
    %c0_44 = arith.constant 0 : index
    %85 = vector.load %arg10[%c5_43, %c0_44] : memref<8x256xf32, #tpu.memory_space<vmem>>, vector<1x128xf32>
    %c6_45 = arith.constant 6 : index
    %c0_46 = arith.constant 0 : index
    %86 = vector.load %arg10[%c6_45, %c0_46] : memref<8x256xf32, #tpu.memory_space<vmem>>, vector<1x128xf32>
    %87 = arith.truncf %79 : vector<16x128xf32> to vector<16x128xbf16>
    %c0_47 = arith.constant 0 : index
    %c0_48 = arith.constant 0 : index
    %88 = vector.load %arg7[%c0_47, %c0_48] : memref<128x128xbf16, #tpu.memory_space<vmem>>, vector<128x128xbf16>
    %cst_49 = arith.constant dense<0.000000e+00> : vector<16x128xf32>
    %89 = tpu.matmul %87, %88, %cst_49 {dimension_numbers = #tpu.dot_dimension_numbers<[1], [0], [0], [1], [0, 0, 1, 1], [], []>} : vector<16x128xbf16>, vector<128x128xbf16>, vector<16x128xf32> -> vector<16x128xf32>
    %90 = vector.broadcast %80 : vector<1x128xf32> to vector<16x128xf32>
    %91 = arith.addf %89, %90 : vector<16x128xf32>
    %92 = arith.addf %79, %91 : vector<16x128xf32>
    %cst_50 = arith.constant dense<0.000000e+00> : vector<16xf32>
    %93 = vector.multi_reduction <add>, %92, %cst_50 [1] : vector<16x128xf32> to vector<16xf32>
    %94 = vector.shape_cast %93 : vector<16xf32> to vector<16x1xf32>
    %cst_51 = arith.constant 1.280000e+02 : f32
    %95 = vector.broadcast %cst_51 : f32 to vector<16x1xf32>
    %96 = arith.divf %94, %95 : vector<16x1xf32>
    %97 = arith.mulf %92, %92 : vector<16x128xf32>
    %cst_52 = arith.constant dense<0.000000e+00> : vector<16xf32>
    %98 = vector.multi_reduction <add>, %97, %cst_52 [1] : vector<16x128xf32> to vector<16xf32>
    %99 = vector.shape_cast %98 : vector<16xf32> to vector<16x1xf32>
    %cst_53 = arith.constant 1.280000e+02 : f32
    %100 = vector.broadcast %cst_53 : f32 to vector<16x1xf32>
    %101 = arith.divf %99, %100 : vector<16x1xf32>
    %102 = arith.mulf %96, %96 : vector<16x1xf32>
    %103 = arith.subf %101, %102 : vector<16x1xf32>
    %104 = vector.broadcast %96 : vector<16x1xf32> to vector<16x128xf32>
    %105 = arith.subf %92, %104 : vector<16x128xf32>
    %cst_54 = arith.constant 9.99999974E-6 : f32
    %106 = vector.broadcast %cst_54 : f32 to vector<16x1xf32>
    %107 = arith.addf %103, %106 : vector<16x1xf32>
    %108 = math.rsqrt %107 : vector<16x1xf32>
    %109 = vector.broadcast %108 : vector<16x1xf32> to vector<16x128xf32>
    %110 = arith.mulf %105, %109 : vector<16x128xf32>
    %111 = vector.broadcast %81 : vector<1x128xf32> to vector<16x128xf32>
    %112 = arith.mulf %110, %111 : vector<16x128xf32>
    %113 = vector.broadcast %82 : vector<1x128xf32> to vector<16x128xf32>
    %114 = arith.addf %112, %113 : vector<16x128xf32>
    %115 = arith.truncf %114 : vector<16x128xf32> to vector<16x128xbf16>
    %c0_55 = arith.constant 0 : index
    %c0_56 = arith.constant 0 : index
    %116 = vector.load %arg8[%c0_55, %c0_56] : memref<128x256xbf16, #tpu.memory_space<vmem>>, vector<128x256xbf16>
    %cst_57 = arith.constant dense<0.000000e+00> : vector<16x256xf32>
    %117 = tpu.matmul %115, %116, %cst_57 {dimension_numbers = #tpu.dot_dimension_numbers<[1], [0], [0], [1], [0, 0, 1, 1], [], []>} : vector<16x128xbf16>, vector<128x256xbf16>, vector<16x256xf32> -> vector<16x256xf32>
    %118 = vector.broadcast %83 : vector<1x256xf32> to vector<16x256xf32>
    %119 = arith.addf %117, %118 : vector<16x256xf32>
    %cst_58 = arith.constant 0.000000e+00 : f32
    %120 = vector.broadcast %cst_58 : f32 to vector<16x256xf32>
    %121 = arith.maximumf %119, %120 : vector<16x256xf32>
    %122 = arith.truncf %121 : vector<16x256xf32> to vector<16x256xbf16>
    %c0_59 = arith.constant 0 : index
    %c0_60 = arith.constant 0 : index
    %123 = vector.load %arg9[%c0_59, %c0_60] : memref<256x128xbf16, #tpu.memory_space<vmem>>, vector<256x128xbf16>
    %cst_61 = arith.constant dense<0.000000e+00> : vector<16x128xf32>
    %124 = tpu.matmul %122, %123, %cst_61 {dimension_numbers = #tpu.dot_dimension_numbers<[1], [0], [0], [1], [0, 0, 1, 1], [], []>} : vector<16x256xbf16>, vector<256x128xbf16>, vector<16x128xf32> -> vector<16x128xf32>
    %125 = vector.broadcast %84 : vector<1x128xf32> to vector<16x128xf32>
    %126 = arith.addf %124, %125 : vector<16x128xf32>
    %127 = arith.addf %114, %126 : vector<16x128xf32>
    %cst_62 = arith.constant dense<0.000000e+00> : vector<16xf32>
    %128 = vector.multi_reduction <add>, %127, %cst_62 [1] : vector<16x128xf32> to vector<16xf32>
    %129 = vector.shape_cast %128 : vector<16xf32> to vector<16x1xf32>
    %cst_63 = arith.constant 1.280000e+02 : f32
    %130 = vector.broadcast %cst_63 : f32 to vector<16x1xf32>
    %131 = arith.divf %129, %130 : vector<16x1xf32>
    %132 = arith.mulf %127, %127 : vector<16x128xf32>
    %cst_64 = arith.constant dense<0.000000e+00> : vector<16xf32>
    %133 = vector.multi_reduction <add>, %132, %cst_64 [1] : vector<16x128xf32> to vector<16xf32>
    %134 = vector.shape_cast %133 : vector<16xf32> to vector<16x1xf32>
    %cst_65 = arith.constant 1.280000e+02 : f32
    %135 = vector.broadcast %cst_65 : f32 to vector<16x1xf32>
    %136 = arith.divf %134, %135 : vector<16x1xf32>
    %137 = arith.mulf %131, %131 : vector<16x1xf32>
    %138 = arith.subf %136, %137 : vector<16x1xf32>
    %139 = vector.broadcast %131 : vector<16x1xf32> to vector<16x128xf32>
    %140 = arith.subf %127, %139 : vector<16x128xf32>
    %cst_66 = arith.constant 9.99999974E-6 : f32
    %141 = vector.broadcast %cst_66 : f32 to vector<16x1xf32>
    %142 = arith.addf %138, %141 : vector<16x1xf32>
    %143 = math.rsqrt %142 : vector<16x1xf32>
    %144 = vector.broadcast %143 : vector<16x1xf32> to vector<16x128xf32>
    %145 = arith.mulf %140, %144 : vector<16x128xf32>
    %146 = vector.broadcast %85 : vector<1x128xf32> to vector<16x128xf32>
    %147 = arith.mulf %145, %146 : vector<16x128xf32>
    %148 = vector.broadcast %86 : vector<1x128xf32> to vector<16x128xf32>
    %149 = arith.addf %147, %148 : vector<16x128xf32>
    %c0_67 = arith.constant 0 : index
    %c0_68 = arith.constant 0 : index
    %150 = vector.load %arg11[%c0_67, %c0_68] : memref<16x128xf32, #tpu.memory_space<vmem>>, vector<16x128xf32>
    tpu.vector_store %arg11[%c0_67, %c0_68], %149 {strides = array<i32>} : memref<16x128xf32, #tpu.memory_space<vmem>>, vector<16x128xf32>,
    return
  }
}

</mosaic_0001>

<llo_original>
// kernel: encoder_forward.1
$region0: #{encoder_forward.1}
  #allocation0 [shape = 'u32[]', space=smem, size = 0x4, offset = 0x4, fixed_abs, tag = 'smem constant byte address 0x4 - core index']
  #allocation1 [shape = 'u32[144,128]{1,0:T(1,128)}', space=vmem, size = 0x12000, scoped, tag = 'internal scratch']
  %s0 = inlined_call_operand.vmem [shape: s32[16,1], index: 0, kind: input, shape index: {}]
  %s1 = inlined_call_operand.hbm [shape: f32[128,128], index: 1, kind: input, shape index: {}]
  %s2 = inlined_call_operand.vmem [shape: f32[16,128], index: 2, kind: input, shape index: {}]
  %s3 = inlined_call_operand.hbm [shape: bf16[128,128], index: 3, kind: input, shape index: {}]
  %s4 = inlined_call_operand.hbm [shape: bf16[128,256], index: 4, kind: input, shape index: {}]
  %s5 = inlined_call_operand.hbm [shape: bf16[256,128], index: 5, kind: input, shape index: {}]
  %s6 = inlined_call_operand.vmem [shape: f32[8,256], index: 6, kind: input, shape index: {}]
  %s7 = inlined_call_operand.hbm [shape: bf16[128,128], index: 7, kind: input, shape index: {}]
  %s8 = inlined_call_operand.hbm [shape: bf16[128,256], index: 8, kind: input, shape index: {}]
  %s9 = inlined_call_operand.hbm [shape: bf16[256,128], index: 9, kind: input, shape index: {}]
  %s10 = inlined_call_operand.hbm [shape: f32[8,256], index: 10, kind: input, shape index: {}]
  %s11 = inlined_call_operand.hbm [shape: f32[16,128], index: 11, kind: output, shape index: {}]
  %s12 = sld [smem:[#allocation0]]
  $region86: #{encoder_forward.1} parent=0
    _
  %s14 = ssub.s32 1, %s12
  %s15 = scalar_select 0, %s14, %s12
  $region1: #{encoder_forward.1} parent=0
    #allocation2 [shape = 'u8[65536]{0}', space=vmem, size = 0x10000, scoped, tag = 'input window, operand 1, single buffered']
    #allocation3 [shape = 's32[1]{0}', space=sflag, size = 0x4, scoped, tag = 'scoped memory for encoder_forward.1']
    #allocation4 [shape = 's32[1]{0}', space=sflag, size = 0x4, scoped, tag = 'scoped memory for encoder_forward.1']
    #allocation5 [shape = 'u8[32768]{0}', space=vmem, size = 0x8000, scoped, tag = 'input window, operand 3, single buffered']
    #allocation6 [shape = 's32[1]{0}', space=sflag, size = 0x4, scoped, tag = 'scoped memory for encoder_forward.1']
    #allocation7 [shape = 'u8[65536]{0}', space=vmem, size = 0x10000, scoped, tag = 'input window, operand 4, single buffered']
    #allocation8 [shape = 'u8[65536]{0}', space=vmem, size = 0x10000, scoped, tag = 'input window, operand 5, single buffered']
    #allocation9 [shape = 's32[1]{0}', space=sflag, size = 0x4, scoped, tag = 'scoped memory for encoder_forward.1']
    #allocation10 [shape = 'u8[32768]{0}', space=vmem, size = 0x8000, scoped, tag = 'input window, operand 7, single buffered']
    #allocation11 [shape = 'u8[65536]{0}', space=vmem, size = 0x10000, scoped, tag = 'input window, operand 8, single buffered']
    #allocation12 [shape = 's32[1]{0}', space=sflag, size = 0x4, scoped, tag = 'scoped memory for encoder_forward.1']
    #allocation13 [shape = 'u8[65536]{0}', space=vmem, size = 0x10000, scoped, tag = 'input window, operand 9, single buffered']
    #allocation14 [shape = 'u8[8192]{0}', space=vmem, size = 0x2000, scoped, tag = 'input window, operand 10, single buffered']
    #allocation15 [shape = 's32[1]{0}', space=sflag, size = 0x4, scoped, tag = 'scoped memory for encoder_forward.1']
    #allocation16 [shape = 'u8[8192]{0}', space=vmem, size = 0x2000, scoped, tag = 'output window, operand 0, single buffered']
    %16 = vsyncpa [#allocation3], 0
    %17 = vsyncpa [#allocation6], 0
    %18 = vsyncpa [#allocation9], 0
    %19 = vsyncpa [#allocation12], 0
    %20 = vsyncpa [#allocation15], 0
    %21 = vsyncpa [#allocation4], 0
    // Predicated region
    $region2: #{encoder_forward.1} parent=1 // pred_check
      _
    $region3: #{encoder_forward.1} parent=1 // pred_check_branch
      %23 = sbr.rel (0) target = $region5
    $region4: #{encoder_forward.1} parent=1 // pred_region
      _
    $region5: #{encoder_forward.1} parent=1 // pred_fallthru
      _
    // Predicated region
    $region6: #{encoder_forward.1} parent=1 // pred_check
      _
    $region7: #{encoder_forward.1} parent=1 // pred_check_branch
      %25 = sbr.rel (0) target = $region9
    $region8: #{encoder_forward.1} parent=1 // pred_region
      %s27 = ssub.s32 2048, 2048
      %28 = vsyncadd [#allocation3], %s27
      %s29 = sshll.u32 [#allocation2], 4
      %s30 = int_to_ptr.vmem [resolvable:$true] %s29
      %35 = dma.hbm_to_vmem [thread:$0]  %s1, 2048, %s30, [#allocation3], 128, 128, 8
    $region9: #{encoder_forward.1} parent=1 // pred_fallthru
      _
    // Predicated region
    $region10: #{encoder_forward.1} parent=1 // pred_check
      _
    $region11: #{encoder_forward.1} parent=1 // pred_check_branch
      %37 = sbr.rel (0) target = $region13
    $region12: #{encoder_forward.1} parent=1 // pred_region
      _
    $region13: #{encoder_forward.1} parent=1 // pred_fallthru
      _
    // Predicated region
    $region14: #{encoder_forward.1} parent=1 // pred_check
      _
    $region15: #{encoder_forward.1} parent=1 // pred_check_branch
      %39 = sbr.rel (0) target = $region17
    $region16: #{encoder_forward.1} parent=1 // pred_region
      %s41 = ssub.s32 1024, 1024
      %42 = vsyncadd [#allocation6], %s41
      %s43 = sshll.u32 [#allocation5], 4
      %s44 = int_to_ptr.vmem [resolvable:$true] %s43
      %49 = dma.hbm_to_vmem [thread:$0]  %s3, 1024, %s44, [#allocation6], 64, 64, 4
    $region17: #{encoder_forward.1} parent=1 // pred_fallthru
      _
    // Predicated region
    $region18: #{encoder_forward.1} parent=1 // pred_check
      _
    $region19: #{encoder_forward.1} parent=1 // pred_check_branch
      %51 = sbr.rel (0) target = $region21
    $region20: #{encoder_forward.1} parent=1 // pred_region
      %s53 = ssub.s32 2048, 2048
      %54 = vsyncadd [#allocation6], %s53
      %s55 = sshll.u32 [#allocation7], 4
      %s56 = int_to_ptr.vmem [resolvable:$true] %s55
      %61 = dma.hbm_to_vmem [thread:$0]  %s4, 2048, %s56, [#allocation6], 128, 128, 8
    $region21: #{encoder_forward.1} parent=1 // pred_fallthru
      _
    // Predicated region
    $region22: #{encoder_forward.1} parent=1 // pred_check
      _
    $region23: #{encoder_forward.1} parent=1 // pred_check_branch
      %63 = sbr.rel (0) target = $region25
    $region24: #{encoder_forward.1} parent=1 // pred_region
      %s65 = ssub.s32 2048, 2048
      %66 = vsyncadd [#allocation9], %s65
      %s67 = sshll.u32 [#allocation8], 4
      %s68 = int_to_ptr.vmem [resolvable:$true] %s67
      %73 = dma.hbm_to_vmem [thread:$0]  %s5, 2048, %s68, [#allocation9], 64, 64, 4
    $region25: #{encoder_forward.1} parent=1 // pred_fallthru
      _
    // Predicated region
    $region26: #{encoder_forward.1} parent=1 // pred_check
      _
    $region27: #{encoder_forward.1} parent=1 // pred_check_branch
      %75 = sbr.rel (0) target = $region29
    $region28: #{encoder_forward.1} parent=1 // pred_region
      _
    $region29: #{encoder_forward.1} parent=1 // pred_fallthru
      _
    // Predicated region
    $region30: #{encoder_forward.1} parent=1 // pred_check
      _
    $region31: #{encoder_forward.1} parent=1 // pred_check_branch
      %77 = sbr.rel (0) target = $region33
    $region32: #{encoder_forward.1} parent=1 // pred_region
      %s79 = ssub.s32 1024, 1024
      %80 = vsyncadd [#allocation9], %s79
      %s81 = sshll.u32 [#allocation10], 4
      %s82 = int_to_ptr.vmem [resolvable:$true] %s81
      %87 = dma.hbm_to_vmem [thread:$0]  %s7, 1024, %s82, [#allocation9], 64, 64, 4
    $region33: #{encoder_forward.1} parent=1 // pred_fallthru
      _
    // Predicated region
    $region34: #{encoder_forward.1} parent=1 // pred_check
      _
    $region35: #{encoder_forward.1} parent=1 // pred_check_branch
      %89 = sbr.rel (0) target = $region37
    $region36: #{encoder_forward.1} parent=1 // pred_region
      %s91 = ssub.s32 2048, 2048
      %92 = vsyncadd [#allocation12], %s91
      %s93 = sshll.u32 [#allocation11], 4
      %s94 = int_to_ptr.vmem [resolvable:$true] %s93
      %99 = dma.hbm_to_vmem [thread:$0]  %s8, 2048, %s94, [#allocation12], 128, 128, 8
    $region37: #{encoder_forward.1} parent=1 // pred_fallthru
      _
    // Predicated region
    $region38: #{encoder_forward.1} parent=1 // pred_check
      _
    $region39: #{encoder_forward.1} parent=1 // pred_check_branch
      %101 = sbr.rel (0) target = $region41
    $region40: #{encoder_forward.1} parent=1 // pred_region
      %s103 = ssub.s32 2048, 2048
      %104 = vsyncadd [#allocation12], %s103
      %s105 = sshll.u32 [#allocation13], 4
      %s106 = int_to_ptr.vmem [resolvable:$true] %s105
      %111 = dma.hbm_to_vmem [thread:$0]  %s9, 2048, %s106, [#allocation12], 64, 64, 4
    $region41: #{encoder_forward.1} parent=1 // pred_fallthru
      _
    // Predicated region
    $region42: #{encoder_forward.1} parent=1 // pred_check
      _
    $region43: #{encoder_forward.1} parent=1 // pred_check_branch
      %113 = sbr.rel (0) target = $region45
    $region44: #{encoder_forward.1} parent=1 // pred_region
      %s115 = ssub.s32 256, 256
      %116 = vsyncadd [#allocation15], %s115
      %s118 = sshll.u32 [#allocation14], 4
      %s119 = int_to_ptr.vmem [resolvable:$true] %s118
      %121 = dma.hbm_to_vmem [thread:$0]  %s10, 256, %s119, [#allocation15]
    $region45: #{encoder_forward.1} parent=1 // pred_fallthru
      _
    // Predicated region
    $region46: #{encoder_forward.1} parent=1 // pred_check
      _
    $region47: #{encoder_forward.1} parent=1 // pred_check_branch
      %123 = sbr.rel (0) target = $region49
    $region48: #{encoder_forward.1} parent=1 // pred_region
      %124 = dma.done [#allocation3], 2048
    $region49: #{encoder_forward.1} parent=1 // pred_fallthru
      _
    // Predicated region
    $region50: #{encoder_forward.1} parent=1 // pred_check
      _
    $region51: #{encoder_forward.1} parent=1 // pred_check_branch
      %126 = sbr.rel (0) target = $region53
    $region52: #{encoder_forward.1} parent=1 // pred_region
      %127 = dma.done [#allocation6], 1024
    $region53: #{encoder_forward.1} parent=1 // pred_fallthru
      _
    // Predicated region
    $region54: #{encoder_forward.1} parent=1 // pred_check
      _
    $region55: #{encoder_forward.1} parent=1 // pred_check_branch
      %129 = sbr.rel (0) target = $region57
    $region56: #{encoder_forward.1} parent=1 // pred_region
      %130 = dma.done [#allocation6], 2048
    $region57: #{encoder_forward.1} parent=1 // pred_fallthru
      _
    // Predicated region
    $region58: #{encoder_forward.1} parent=1 // pred_check
      _
    $region59: #{encoder_forward.1} parent=1 // pred_check_branch
      %132 = sbr.rel (0) target = $region61
    $region60: #{encoder_forward.1} parent=1 // pred_region
      %133 = dma.done [#allocation9], 2048
    $region61: #{encoder_forward.1} parent=1 // pred_fallthru
      _
    // Predicated region
    $region62: #{encoder_forward.1} parent=1 // pred_check
      _
    $region63: #{encoder_forward.1} parent=1 // pred_check_branch
      %135 = sbr.rel (0) target = $region65
    $region64: #{encoder_forward.1} parent=1 // pred_region
      %136 = dma.done [#allocation9], 1024
    $region65: #{encoder_forward.1} parent=1 // pred_fallthru
      _
    // Predicated region
    $region66: #{encoder_forward.1} parent=1 // pred_check
      _
    $region67: #{encoder_forward.1} parent=1 // pred_check_branch
      %138 = sbr.rel (0) target = $region69
    $region68: #{encoder_forward.1} parent=1 // pred_region
      %139 = dma.done [#allocation12], 2048
    $region69: #{encoder_forward.1} parent=1 // pred_fallthru
      _
    // Predicated region
    $region70: #{encoder_forward.1} parent=1 // pred_check
      _
    $region71: #{encoder_forward.1} parent=1 // pred_check_branch
      %141 = sbr.rel (0) target = $region73
    $region72: #{encoder_forward.1} parent=1 // pred_region
      %142 = dma.done [#allocation12], 2048
    $region73: #{encoder_forward.1} parent=1 // pred_fallthru
      _
    // Predicated region
    $region74: #{encoder_forward.1} parent=1 // pred_check
      _
    $region75: #{encoder_forward.1} parent=1 // pred_check_branch
      %144 = sbr.rel (0) target = $region77
    $region76: #{encoder_forward.1} parent=1 // pred_region
      %145 = dma.done [#allocation15], 256
    $region77: #{encoder_forward.1} parent=1 // pred_fallthru
      _
    %v147 = vld [vmem:[%s0] sm:$0xff]
    %v148 = vld [vmem:[%s0 + $0x8] sm:$0xff]
    %v149 = vlaneseq
    %v150 = vand.u32 %v149, 127
    %151 = vset.pattern.permute.xlu0 0
    %152 = vperm.xlu0 %151, %v147
    %v153 = vpop.permute.xlu0 %152
    %154 = vset.pattern.permute.xlu0 0
    %155 = vperm.xlu0 %154, %v148
    %v156 = vpop.permute.xlu0 %155
    %vm157 = vcmp.eq.s32.totalorder %v150, %v153
    %vm158 = vcmp.eq.s32.totalorder %v150, %v156
    %v159 = vsel %vm157, 1, 0
    %v160 = vsel %vm158, 1, 0
    %v161 = vcvt.s32.f32 %v159
    %v162 = vcvt.s32.f32 %v160
    %v163 = vld [vmem:[#allocation2] sm:$0xff]
    %v164 = vld [vmem:[#allocation2 + $0x8] sm:$0xff]
    %v165 = vld [vmem:[#allocation2 + $0x10] sm:$0xff]
    %v166 = vld [vmem:[#allocation2 + $0x18] sm:$0xff]
    %v167 = vld [vmem:[#allocation2 + $0x20] sm:$0xff]
    %v168 = vld [vmem:[#allocation2 + $0x28] sm:$0xff]
    %v169 = vld [vmem:[#allocation2 + $0x30] sm:$0xff]
    %v170 = vld [vmem:[#allocation2 + $0x38] sm:$0xff]
    %v171 = vld [vmem:[#allocation2 + $0x40] sm:$0xff]
    %v172 = vld [vmem:[#allocation2 + $0x48] sm:$0xff]
    %v173 = vld [vmem:[#allocation2 + $0x50] sm:$0xff]
    %v174 = vld [vmem:[#allocation2 + $0x58] sm:$0xff]
    %v175 = vld [vmem:[#allocation2 + $0x60] sm:$0xff]
    %v176 = vld [vmem:[#allocation2 + $0x68] sm:$0xff]
    %v177 = vld [vmem:[#allocation2 + $0x70] sm:$0xff]
    %v178 = vld [vmem:[#allocation2 + $0x78] sm:$0xff]
    %v179 = vld [vmem:[%s2] sm:$0xff]
    %v180 = vld [vmem:[%s2 + $0x8] sm:$0xff]
    %181 = vmatprep.subr.mxu0 0.0
    %182 = vmatpush1.msra.mxu0 %v163
    %183 = vmatprep.subr.mxu0 0.0
    %184 = vmatpush1.msra.mxu0 %v164
    %185 = vmatprep.subr.mxu0 0.0
    %186 = vmatpush1.msra.mxu0 %v165
    %187 = vmatprep.subr.mxu0 0.0
    %188 = vmatpush1.msra.mxu0 %v166
    %189 = vmatprep.subr.mxu0 0.0
    %190 = vmatpush1.msra.mxu0 %v167
    %191 = vmatprep.subr.mxu0 0.0
    %192 = vmatpush1.msra.mxu0 %v168
    %193 = vmatprep.subr.mxu0 0.0
    %194 = vmatpush1.msra.mxu0 %v169
    %195 = vmatprep.subr.mxu0 0.0
    %196 = vmatpush1.msra.mxu0 %v170
    %197 = vmatprep.subr.mxu0 0.0
    %198 = vmatpush1.msra.mxu0 %v171
    %199 = vmatprep.subr.mxu0 0.0
    %200 = vmatpush1.msra.mxu0 %v172
    %201 = vmatprep.subr.mxu0 0.0
    %202 = vmatpush1.msra.mxu0 %v173
    %203 = vmatprep.subr.mxu0 0.0
    %204 = vmatpush1.msra.mxu0 %v174
    %205 = vmatprep.subr.mxu0 0.0
    %206 = vmatpush1.msra.mxu0 %v175
    %207 = vmatprep.subr.mxu0 0.0
    %208 = vmatpush1.msra.mxu0 %v176
    %209 = vmatprep.subr.mxu0 0.0
    %210 = vmatpush1.msra.mxu0 %v177
    %211 = vmatprep.subr.mxu0 0.0
    %212 = vmatpush1.msra.mxu0 %v178
    %213 = vmatprep.subr.mxu0 0.0
    %214 = vmatpush1.msra.mxu0 0.0
    %215 = vmatprep.subr.mxu0 0.0
    %216 = vmatpush1.msra.mxu0 0.0
    %217 = vmatprep.subr.mxu0 0.0
    %218 = vmatpush1.msra.mxu0 0.0
    %219 = vmatprep.subr.mxu0 0.0
    %220 = vmatpush1.msra.mxu0 0.0
    %221 = vmatprep.subr.mxu0 0.0
    %222 = vmatpush1.msra.mxu0 0.0
    %223 = vmatprep.subr.mxu0 0.0
    %224 = vmatpush1.msra.mxu0 0.0
    %225 = vmatprep.subr.mxu0 0.0
    %226 = vmatpush1.msra.mxu0 0.0
    %227 = vmatprep.subr.mxu0 0.0
    %228 = vmatpush1.msra.mxu0 0.0
    %229 = vmatprep.subr.mxu0 0.0
    %230 = vmatpush1.msra.mxu0 0.0
    %231 = vmatprep.subr.mxu0 0.0
    %232 = vmatpush1.msra.mxu0 0.0
    %233 = vmatprep.subr.mxu0 0.0
    %234 = vmatpush1.msra.mxu0 0.0
    %235 = vmatprep.subr.mxu0 0.0
    %236 = vmatpush1.msra.mxu0 0.0
    %237 = vmatprep.subr.mxu0 0.0
    %238 = vmatpush1.msra.mxu0 0.0
    %239 = vmatprep.subr.mxu0 0.0
    %240 = vmatpush1.msra.mxu0 0.0
    %241 = vmatprep.subr.mxu0 0.0
    %242 = vmatpush1.msra.mxu0 0.0
    %243 = vmatprep.subr.mxu0 0.0
    %244 = vmatpush1.msra.mxu0 0.0
    %245 = vmatprep.mubr.f32.mxu0 0.0
    %246 = vmatmul.mubr.f32.gmra.mrb[0].mxu0 %v161
    %v247 = vpop.f32.mrb[0].mxu0
    %v248 = vadd.f32 %v179, %v247
    %v249 = vpop.f32.mrb[0].mxu0
    %250 = vmatprep.mubr.f32.mxu0 0.0
    %251 = vmatmul.mubr.f32.gmra.mrb[0].mxu0 %v162
    %v252 = vpop.f32.mrb[0].mxu0
    %v253 = vadd.f32 %v180, %v252
    %v254 = vpop.f32.mrb[0].mxu0
    %255 = vdwg.mxu0
    %v256 = vld [vmem:[%s6] ss:$0 sm:$0xff]
    %v257 = vld [vmem:[%s6 + $0x1] ss:$0 sm:$0xff]
    %v258 = vld [vmem:[%s6 + $0x2] ss:$0 sm:$0xff]
    %s259 = scalar_lea.vmem %s6, 3
    %v260 = vld [vmem:[%s259] ss:$8 sm:$0x3]
    %v261 = vld [vmem:[%s6 + $0x4] ss:$0 sm:$0xff]
    %v262 = vld [vmem:[%s6 + $0x5] ss:$0 sm:$0xff]
    %v263 = vld [vmem:[%s6 + $0x6] ss:$0 sm:$0xff]
    %v264 = vpack.c.bf16 %v253, %v248
    %v265 = vld [vmem:[#allocation5] sm:$0xf]
    %v266 = vld [vmem:[#allocation5 + $0x4] sm:$0xf]
    %v267 = vld [vmem:[#allocation5 + $0x8] sm:$0xf]
    %v268 = vld [vmem:[#allocation5 + $0xc] sm:$0xf]
    %v269 = vld [vmem:[#allocation5 + $0x10] sm:$0xf]
    %v270 = vld [vmem:[#allocation5 + $0x14] sm:$0xf]
    %v271 = vld [vmem:[#allocation5 + $0x18] sm:$0xf]
    %v272 = vld [vmem:[#allocation5 + $0x1c] sm:$0xf]
    %v273 = vld [vmem:[#allocation5 + $0x20] sm:$0xf]
    %v274 = vld [vmem:[#allocation5 + $0x24] sm:$0xf]
    %v275 = vld [vmem:[#allocation5 + $0x28] sm:$0xf]
    %v276 = vld [vmem:[#allocation5 + $0x2c] sm:$0xf]
    %v277 = vld [vmem:[#allocation5 + $0x30] sm:$0xf]
    %v278 = vld [vmem:[#allocation5 + $0x34] sm:$0xf]
    %v279 = vld [vmem:[#allocation5 + $0x38] sm:$0xf]
    %v280 = vld [vmem:[#allocation5 + $0x3c] sm:$0xf]
    %v297 = vunpack.c.l.b16 %v265
    %v298 = vunpack.c.l.b16 %v266
    %v299 = vunpack.c.l.b16 %v267
    %v300 = vunpack.c.l.b16 %v268
    %v301 = vunpack.c.l.b16 %v269
    %v302 = vunpack.c.l.b16 %v270
    %v303 = vunpack.c.l.b16 %v271
    %v304 = vunpack.c.l.b16 %v272
    %v305 = vunpack.c.l.b16 %v273
    %v306 = vunpack.c.l.b16 %v274
    %v307 = vunpack.c.l.b16 %v275
    %v308 = vunpack.c.l.b16 %v276
    %v309 = vunpack.c.l.b16 %v277
    %v310 = vunpack.c.l.b16 %v278
    %v311 = vunpack.c.l.b16 %v279
    %v312 = vunpack.c.l.b16 %v280
    %v313 = vpack.c.b16 %v298, %v297
    %v314 = vpack.c.b16 %v300, %v299
    %v315 = vpack.c.b16 %v302, %v301
    %v316 = vpack.c.b16 %v304, %v303
    %v317 = vpack.c.b16 %v306, %v305
    %v318 = vpack.c.b16 %v308, %v307
    %v319 = vpack.c.b16 %v310, %v309
    %v320 = vpack.c.b16 %v312, %v311
    %329 = vmatprep.subr.bf16.mxu0 0
    %330 = vmatpush1.bf16.msra.mxu0 %v313
    %331 = vmatprep.subr.bf16.mxu0 0
    %332 = vmatpush1.bf16.msra.mxu0 %v314
    %333 = vmatprep.subr.bf16.mxu0 0
    %334 = vmatpush1.bf16.msra.mxu0 %v315
    %335 = vmatprep.subr.bf16.mxu0 0
    %336 = vmatpush1.bf16.msra.mxu0 %v316
    %337 = vmatprep.subr.bf16.mxu0 0
    %338 = vmatpush1.bf16.msra.mxu0 %v317
    %339 = vmatprep.subr.bf16.mxu0 0
    %340 = vmatpush1.bf16.msra.mxu0 %v318
    %341 = vmatprep.subr.bf16.mxu0 0
    %342 = vmatpush1.bf16.msra.mxu0 %v319
    %343 = vmatprep.subr.bf16.mxu0 0
    %344 = vmatpush1.bf16.msra.mxu0 %v320
    %345 = vmatprep.subr.bf16.mxu0 0
    %346 = vmatpush1.bf16.msra.mxu0 0
    %347 = vmatprep.subr.bf16.mxu0 0
    %348 = vmatpush1.bf16.msra.mxu0 0
    %349 = vmatprep.subr.bf16.mxu0 0
    %350 = vmatpush1.bf16.msra.mxu0 0
    %351 = vmatprep.subr.bf16.mxu0 0
    %352 = vmatpush1.bf16.msra.mxu0 0
    %353 = vmatprep.subr.bf16.mxu0 0
    %354 = vmatpush1.bf16.msra.mxu0 0
    %355 = vmatprep.subr.bf16.mxu0 0
    %356 = vmatpush1.bf16.msra.mxu0 0
    %357 = vmatprep.subr.bf16.mxu0 0
    %358 = vmatpush1.bf16.msra.mxu0 0
    %359 = vmatprep.subr.bf16.mxu0 0
    %360 = vmatpush1.bf16.msra.mxu0 0
    %361 = vmatprep.mubr.bf16.mxu0 0
    %362 = vmatmul.mubr.bf16.gmra.mrb[0].mxu0 %v264
    %v363 = vpop.f32.mrb[0].mxu0
    %v364 = vadd.f32 %v256, %v363
    %v365 = vpop.f32.mrb[0].mxu0
    %v366 = vpop.f32.mrb[0].mxu0
    %v367 = vadd.f32 %v256, %v366
    %v368 = vpop.f32.mrb[0].mxu0
    %369 = vdwg.mxu0
    %v370 = vadd.f32 %v248, %v364
    %v371 = vadd.f32 %v253, %v367
    %372 = vadd.xlane.f32.xlu0 %v370
    %v373 = vpop.xlane.xlu0 %372
    %374 = vadd.xlane.f32.xlu0 %v371
    %v375 = vpop.xlane.xlu0 %374
    %v376 = vrcp.pop 128.0
    %v377 = vmul.f32 %v373, %v376
    %v378 = vmul.f32 %v375, %v376
    %v379 = vmul.f32 %v370, %v370
    %v380 = vmul.f32 %v371, %v371
    %381 = vadd.xlane.f32.xlu0 %v379
    %v382 = vpop.xlane.xlu0 %381
    %383 = vadd.xlane.f32.xlu0 %v380
    %v384 = vpop.xlane.xlu0 %383
    %v385 = vmul.f32 %v382, %v376
    %v386 = vmul.f32 %v384, %v376
    %v387 = vmul.f32 %v377, %v377
    %v388 = vmul.f32 %v378, %v378
    %v389 = vsub.f32 %v385, %v387
    %v390 = vsub.f32 %v386, %v388
    %v391 = vsub.f32 %v370, %v377
    %v392 = vsub.f32 %v371, %v378
    %v393 = vadd.f32 %v389, 1e-05
    %v394 = vadd.f32 %v390, 1e-05
    %v395 = vrsqrt.pop %v393
    %v396 = vrsqrt.pop %v394
    %v397 = vmul.f32 %v391, %v395
    %v398 = vmul.f32 %v392, %v396
    %v399 = vmul.f32 %v397, %v257
    %v400 = vmul.f32 %v398, %v257
    %v401 = vadd.f32 %v399, %v258
    %v402 = vadd.f32 %v400, %v258
    %v403 = vpack.c.bf16 %v402, %v401
    %v404 = vld [vmem:[#allocation7] sm:$0xff]
    %v405 = vld [vmem:[#allocation7 + $0x8] sm:$0xff]
    %v406 = vld [vmem:[#allocation7 + $0x10] sm:$0xff]
    %v407 = vld [vmem:[#allocation7 + $0x18] sm:$0xff]
    %v408 = vld [vmem:[#allocation7 + $0x20] sm:$0xff]
    %v409 = vld [vmem:[#allocation7 + $0x28] sm:$0xff]
    %v410 = vld [vmem:[#allocation7 + $0x30] sm:$0xff]
    %v411 = vld [vmem:[#allocation7 + $0x38] sm:$0xff]
    %v412 = vld [vmem:[#allocation7 + $0x40] sm:$0xff]
    %v413 = vld [vmem:[#allocation7 + $0x48] sm:$0xff]
    %v414 = vld [vmem:[#allocation7 + $0x50] sm:$0xff]
    %v415 = vld [vmem:[#allocation7 + $0x58] sm:$0xff]
    %v416 = vld [vmem:[#allocation7 + $0x60] sm:$0xff]
    %v417 = vld [vmem:[#allocation7 + $0x68] sm:$0xff]
    %v418 = vld [vmem:[#allocation7 + $0x70] sm:$0xff]
    %v419 = vld [vmem:[#allocation7 + $0x78] sm:$0xff]
    %v421 = vlaneseq
    %v422 = vshrl.u32 %v421, 7
    %v423 = vsub.s32 0, %v422
    %v424 = vrot.slane %v260, %v423
    %v425 = vlaneseq
    %v426 = vshrl.u32 %v425, 7
    %v427 = vsub.s32 1, %v426
    %v428 = vrot.slane %v260, %v427
    %v447 = vunpack.c.l.b16 %v404
    %v448 = vunpack.c.h.b16 %v404
    %v449 = vunpack.c.l.b16 %v405
    %v450 = vunpack.c.h.b16 %v405
    %v451 = vunpack.c.l.b16 %v406
    %v452 = vunpack.c.h.b16 %v406
    %v453 = vunpack.c.l.b16 %v407
    %v454 = vunpack.c.h.b16 %v407
    %v455 = vunpack.c.l.b16 %v408
    %v456 = vunpack.c.h.b16 %v408
    %v457 = vunpack.c.l.b16 %v409
    %v458 = vunpack.c.h.b16 %v409
    %v459 = vunpack.c.l.b16 %v410
    %v460 = vunpack.c.h.b16 %v410
    %v461 = vunpack.c.l.b16 %v411
    %v462 = vunpack.c.h.b16 %v411
    %v463 = vunpack.c.l.b16 %v412
    %v464 = vunpack.c.h.b16 %v412
    %v465 = vunpack.c.l.b16 %v413
    %v466 = vunpack.c.h.b16 %v413
    %v467 = vunpack.c.l.b16 %v414
    %v468 = vunpack.c.h.b16 %v414
    %v469 = vunpack.c.l.b16 %v415
    %v470 = vunpack.c.h.b16 %v415
    %v471 = vunpack.c.l.b16 %v416
    %v472 = vunpack.c.h.b16 %v416
    %v473 = vunpack.c.l.b16 %v417
    %v474 = vunpack.c.h.b16 %v417
    %v475 = vunpack.c.l.b16 %v418
    %v476 = vunpack.c.h.b16 %v418
    %v477 = vunpack.c.l.b16 %v419
    %v478 = vunpack.c.h.b16 %v419
    %v479 = vpack.c.b16 %v449, %v447
    %v480 = vpack.c.b16 %v450, %v448
    %v481 = vpack.c.b16 %v453, %v451
    %v482 = vpack.c.b16 %v454, %v452
    %v483 = vpack.c.b16 %v457, %v455
    %v484 = vpack.c.b16 %v458, %v456
    %v485 = vpack.c.b16 %v461, %v459
    %v486 = vpack.c.b16 %v462, %v460
    %v487 = vpack.c.b16 %v465, %v463
    %v488 = vpack.c.b16 %v466, %v464
    %v489 = vpack.c.b16 %v469, %v467
    %v490 = vpack.c.b16 %v470, %v468
    %v491 = vpack.c.b16 %v473, %v471
    %v492 = vpack.c.b16 %v474, %v472
    %v493 = vpack.c.b16 %v477, %v475
    %v494 = vpack.c.b16 %v478, %v476
    %511 = vmatprep.subr.bf16.mxu0 %v480
    %512 = vmatpush1.bf16.msra.mxu0 %v479
    %513 = vmatprep.subr.bf16.mxu0 %v482
    %514 = vmatpush1.bf16.msra.mxu0 %v481
    %515 = vmatprep.subr.bf16.mxu0 %v484
    %516 = vmatpush1.bf16.msra.mxu0 %v483
    %517 = vmatprep.subr.bf16.mxu0 %v486
    %518 = vmatpush1.bf16.msra.mxu0 %v485
    %519 = vmatprep.subr.bf16.mxu0 %v488
    %520 = vmatpush1.bf16.msra.mxu0 %v487
    %521 = vmatprep.subr.bf16.mxu0 %v490
    %522 = vmatpush1.bf16.msra.mxu0 %v489
    %523 = vmatprep.subr.bf16.mxu0 %v492
    %524 = vmatpush1.bf16.msra.mxu0 %v491
    %525 = vmatprep.subr.bf16.mxu0 %v494
    %526 = vmatpush1.bf16.msra.mxu0 %v493
    %527 = vmatprep.subr.bf16.mxu0 0
    %528 = vmatpush1.bf16.msra.mxu0 0
    %529 = vmatprep.subr.bf16.mxu0 0
    %530 = vmatpush1.bf16.msra.mxu0 0
    %531 = vmatprep.subr.bf16.mxu0 0
    %532 = vmatpush1.bf16.msra.mxu0 0
    %533 = vmatprep.subr.bf16.mxu0 0
    %534 = vmatpush1.bf16.msra.mxu0 0
    %535 = vmatprep.subr.bf16.mxu0 0
    %536 = vmatpush1.bf16.msra.mxu0 0
    %537 = vmatprep.subr.bf16.mxu0 0
    %538 = vmatpush1.bf16.msra.mxu0 0
    %539 = vmatprep.subr.bf16.mxu0 0
    %540 = vmatpush1.bf16.msra.mxu0 0
    %541 = vmatprep.subr.bf16.mxu0 0
    %542 = vmatpush1.bf16.msra.mxu0 0
    %543 = vmatprep.mubr.bf16.mxu0 0
    %544 = vmatmul.mubr.bf16.gmra.mrb[0].mxu0 %v403
    %v545 = vpop.f32.mrb[0].mxu0
    %v546 = vadd.f32 %v424, %v545
    %v547 = vpop.f32.mrb[0].mxu0
    %v548 = vadd.f32 %v428, %v547
    %v549 = vpop.f32.mrb[0].mxu0
    %v550 = vadd.f32 %v424, %v549
    %v551 = vpop.f32.mrb[0].mxu0
    %v552 = vadd.f32 %v428, %v551
    %553 = vdwg.mxu0
    %v554 = vmax.f32 %v546, 0.0
    %v555 = vmax.f32 %v548, 0.0
    %v556 = vmax.f32 %v550, 0.0
    %v557 = vmax.f32 %v552, 0.0
    %v558 = vpack.c.bf16 %v556, %v554
    %v559 = vpack.c.bf16 %v557, %v555
    %v560 = vld [vmem:[#allocation8] sm:$0xf]
    %v561 = vld [vmem:[#allocation8 + $0x4] sm:$0xf]
    %v562 = vld [vmem:[#allocation8 + $0x8] sm:$0xf]
    %v563 = vld [vmem:[#allocation8 + $0xc] sm:$0xf]
    %v564 = vld [vmem:[#allocation8 + $0x10] sm:$0xf]
    %v565 = vld [vmem:[#allocation8 + $0x14] sm:$0xf]
    %v566 = vld [vmem:[#allocation8 + $0x18] sm:$0xf]
    %v567 = vld [vmem:[#allocation8 + $0x1c] sm:$0xf]
    %v568 = vld [vmem:[#allocation8 + $0x20] sm:$0xf]
    %v569 = vld [vmem:[#allocation8 + $0x24] sm:$0xf]
    %v570 = vld [vmem:[#allocation8 + $0x28] sm:$0xf]
    %v571 = vld [vmem:[#allocation8 + $0x2c] sm:$0xf]
    %v572 = vld [vmem:[#allocation8 + $0x30] sm:$0xf]
    %v573 = vld [vmem:[#allocation8 + $0x34] sm:$0xf]
    %v574 = vld [vmem:[#allocation8 + $0x38] sm:$0xf]
    %v575 = vld [vmem:[#allocation8 + $0x3c] sm:$0xf]
    %v576 = vld [vmem:[#allocation8 + $0x40] sm:$0xf]
    %v577 = vld [vmem:[#allocation8 + $0x44] sm:$0xf]
    %v578 = vld [vmem:[#allocation8 + $0x48] sm:$0xf]
    %v579 = vld [vmem:[#allocation8 + $0x4c] sm:$0xf]
    %v580 = vld [vmem:[#allocation8 + $0x50] sm:$0xf]
    %v581 = vld [vmem:[#allocation8 + $0x54] sm:$0xf]
    %v582 = vld [vmem:[#allocation8 + $0x58] sm:$0xf]
    %v583 = vld [vmem:[#allocation8 + $0x5c] sm:$0xf]
    %v584 = vld [vmem:[#allocation8 + $0x60] sm:$0xf]
    %v585 = vld [vmem:[#allocation8 + $0x64] sm:$0xf]
    %v586 = vld [vmem:[#allocation8 + $0x68] sm:$0xf]
    %v587 = vld [vmem:[#allocation8 + $0x6c] sm:$0xf]
    %v588 = vld [vmem:[#allocation8 + $0x70] sm:$0xf]
    %v589 = vld [vmem:[#allocation8 + $0x74] sm:$0xf]
    %v590 = vld [vmem:[#allocation8 + $0x78] sm:$0xf]
    %v591 = vld [vmem:[#allocation8 + $0x7c] sm:$0xf]
    %v624 = vunpack.c.l.b16 %v560
    %v625 = vunpack.c.l.b16 %v561
    %v626 = vunpack.c.l.b16 %v562
    %v627 = vunpack.c.l.b16 %v563
    %v628 = vunpack.c.l.b16 %v564
    %v629 = vunpack.c.l.b16 %v565
    %v630 = vunpack.c.l.b16 %v566
    %v631 = vunpack.c.l.b16 %v567
    %v632 = vunpack.c.l.b16 %v568
    %v633 = vunpack.c.l.b16 %v569
    %v634 = vunpack.c.l.b16 %v570
    %v635 = vunpack.c.l.b16 %v571
    %v636 = vunpack.c.l.b16 %v572
    %v637 = vunpack.c.l.b16 %v573
    %v638 = vunpack.c.l.b16 %v574
    %v639 = vunpack.c.l.b16 %v575
    %v640 = vunpack.c.l.b16 %v576
    %v641 = vunpack.c.l.b16 %v577
    %v642 = vunpack.c.l.b16 %v578
    %v643 = vunpack.c.l.b16 %v579
    %v644 = vunpack.c.l.b16 %v580
    %v645 = vunpack.c.l.b16 %v581
    %v646 = vunpack.c.l.b16 %v582
    %v647 = vunpack.c.l.b16 %v583
    %v648 = vunpack.c.l.b16 %v584
    %v649 = vunpack.c.l.b16 %v585
    %v650 = vunpack.c.l.b16 %v586
    %v651 = vunpack.c.l.b16 %v587
    %v652 = vunpack.c.l.b16 %v588
    %v653 = vunpack.c.l.b16 %v589
    %v654 = vunpack.c.l.b16 %v590
    %v655 = vunpack.c.l.b16 %v591
    %v656 = vpack.c.b16 %v625, %v624
    %v657 = vpack.c.b16 %v627, %v626
    %v658 = vpack.c.b16 %v629, %v628
    %v659 = vpack.c.b16 %v631, %v630
    %v660 = vpack.c.b16 %v633, %v632
    %v661 = vpack.c.b16 %v635, %v634
    %v662 = vpack.c.b16 %v637, %v636
    %v663 = vpack.c.b16 %v639, %v638
    %v664 = vpack.c.b16 %v641, %v640
    %v665 = vpack.c.b16 %v643, %v642
    %v666 = vpack.c.b16 %v645, %v644
    %v667 = vpack.c.b16 %v647, %v646
    %v668 = vpack.c.b16 %v649, %v648
    %v669 = vpack.c.b16 %v651, %v650
    %v670 = vpack.c.b16 %v653, %v652
    %v671 = vpack.c.b16 %v655, %v654
    %688 = vmatprep.subr.bf16.mxu0 0
    %689 = vmatpush1.bf16.msra.mxu0 %v656
    %690 = vmatprep.subr.bf16.mxu0 0
    %691 = vmatpush1.bf16.msra.mxu0 %v657
    %692 = vmatprep.subr.bf16.mxu0 0
    %693 = vmatpush1.bf16.msra.mxu0 %v658
    %694 = vmatprep.subr.bf16.mxu0 0
    %695 = vmatpush1.bf16.msra.mxu0 %v659
    %696 = vmatprep.subr.bf16.mxu0 0
    %697 = vmatpush1.bf16.msra.mxu0 %v660
    %698 = vmatprep.subr.bf16.mxu0 0
    %699 = vmatpush1.bf16.msra.mxu0 %v661
    %700 = vmatprep.subr.bf16.mxu0 0
    %701 = vmatpush1.bf16.msra.mxu0 %v662
    %702 = vmatprep.subr.bf16.mxu0 0
    %703 = vmatpush1.bf16.msra.mxu0 %v663
    %704 = vmatprep.subr.bf16.mxu0 0
    %705 = vmatpush1.bf16.msra.mxu0 %v664
    %706 = vmatprep.subr.bf16.mxu0 0
    %707 = vmatpush1.bf16.msra.mxu0 %v665
    %708 = vmatprep.subr.bf16.mxu0 0
    %709 = vmatpush1.bf16.msra.mxu0 %v666
    %710 = vmatprep.subr.bf16.mxu0 0
    %711 = vmatpush1.bf16.msra.mxu0 %v667
    %712 = vmatprep.subr.bf16.mxu0 0
    %713 = vmatpush1.bf16.msra.mxu0 %v668
    %714 = vmatprep.subr.bf16.mxu0 0
    %715 = vmatpush1.bf16.msra.mxu0 %v669
    %716 = vmatprep.subr.bf16.mxu0 0
    %717 = vmatpush1.bf16.msra.mxu0 %v670
    %718 = vmatprep.subr.bf16.mxu0 0
    %719 = vmatpush1.bf16.msra.mxu0 %v671
    %720 = vmatprep.mubr.bf16.mxu0 %v559
    %721 = vmatmul.mubr.bf16.gmra.mrb[0].mxu0 %v558
    %v722 = vpop.f32.mrb[0].mxu0
    %v723 = vadd.f32 %v261, %v722
    %v724 = vpop.f32.mrb[0].mxu0
    %v725 = vpop.f32.mrb[0].mxu0
    %v726 = vadd.f32 %v261, %v725
    %v727 = vpop.f32.mrb[0].mxu0
    %728 = vdwg.mxu0
    %v729 = vadd.f32 %v401, %v723
    %v730 = vadd.f32 %v402, %v726
    %731 = vadd.xlane.f32.xlu0 %v729
    %v732 = vpop.xlane.xlu0 %731
    %733 = vadd.xlane.f32.xlu0 %v730
    %v734 = vpop.xlane.xlu0 %733
    %v735 = vmul.f32 %v732, %v376
    %v736 = vmul.f32 %v734, %v376
    %v737 = vmul.f32 %v729, %v729
    %v738 = vmul.f32 %v730, %v730
    %739 = vadd.xlane.f32.xlu0 %v737
    %v740 = vpop.xlane.xlu0 %739
    %741 = vadd.xlane.f32.xlu0 %v738
    %v742 = vpop.xlane.xlu0 %741
    %v743 = vmul.f32 %v740, %v376
    %v744 = vmul.f32 %v742, %v376
    %v745 = vmul.f32 %v735, %v735
    %v746 = vmul.f32 %v736, %v736
    %v747 = vsub.f32 %v743, %v745
    %v748 = vsub.f32 %v744, %v746
    %v749 = vsub.f32 %v729, %v735
    %v750 = vsub.f32 %v730, %v736
    %v751 = vadd.f32 %v747, 1e-05
    %v752 = vadd.f32 %v748, 1e-05
    %v753 = vrsqrt.pop %v751
    %v754 = vrsqrt.pop %v752
    %v755 = vmul.f32 %v749, %v753
    %v756 = vmul.f32 %v750, %v754
    %v757 = vmul.f32 %v755, %v262
    %v758 = vmul.f32 %v756, %v262
    %v759 = vadd.f32 %v757, %v263
    %v760 = vadd.f32 %v758, %v263
    %v761 = vld [vmem:[#allocation14] ss:$0 sm:$0xff]
    %v762 = vld [vmem:[#allocation14 + $0x1] ss:$0 sm:$0xff]
    %v763 = vld [vmem:[#allocation14 + $0x2] ss:$0 sm:$0xff]
    %s764 = scalar_lea.vmem [#allocation14], 3
    %v765 = vld [vmem:[%s764] ss:$8 sm:$0x3]
    %v766 = vld [vmem:[#allocation14 + $0x4] ss:$0 sm:$0xff]
    %v767 = vld [vmem:[#allocation14 + $0x5] ss:$0 sm:$0xff]
    %v768 = vld [vmem:[#allocation14 + $0x6] ss:$0 sm:$0xff]
    %v769 = vpack.c.bf16 %v760, %v759
    %v770 = vld [vmem:[#allocation10] sm:$0xf]
    %v771 = vld [vmem:[#allocation10 + $0x4] sm:$0xf]
    %v772 = vld [vmem:[#allocation10 + $0x8] sm:$0xf]
    %v773 = vld [vmem:[#allocation10 + $0xc] sm:$0xf]
    %v774 = vld [vmem:[#allocation10 + $0x10] sm:$0xf]
    %v775 = vld [vmem:[#allocation10 + $0x14] sm:$0xf]
    %v776 = vld [vmem:[#allocation10 + $0x18] sm:$0xf]
    %v777 = vld [vmem:[#allocation10 + $0x1c] sm:$0xf]
    %v778 = vld [vmem:[#allocation10 + $0x20] sm:$0xf]
    %v779 = vld [vmem:[#allocation10 + $0x24] sm:$0xf]
    %v780 = vld [vmem:[#allocation10 + $0x28] sm:$0xf]
    %v781 = vld [vmem:[#allocation10 + $0x2c] sm:$0xf]
    %v782 = vld [vmem:[#allocation10 + $0x30] sm:$0xf]
    %v783 = vld [vmem:[#allocation10 + $0x34] sm:$0xf]
    %v784 = vld [vmem:[#allocation10 + $0x38] sm:$0xf]
    %v785 = vld [vmem:[#allocation10 + $0x3c] sm:$0xf]
    %v802 = vunpack.c.l.b16 %v770
    %v803 = vunpack.c.l.b16 %v771
    %v804 = vunpack.c.l.b16 %v772
    %v805 = vunpack.c.l.b16 %v773
    %v806 = vunpack.c.l.b16 %v774
    %v807 = vunpack.c.l.b16 %v775
    %v808 = vunpack.c.l.b16 %v776
    %v809 = vunpack.c.l.b16 %v777
    %v810 = vunpack.c.l.b16 %v778
    %v811 = vunpack.c.l.b16 %v779
    %v812 = vunpack.c.l.b16 %v780
    %v813 = vunpack.c.l.b16 %v781
    %v814 = vunpack.c.l.b16 %v782
    %v815 = vunpack.c.l.b16 %v783
    %v816 = vunpack.c.l.b16 %v784
    %v817 = vunpack.c.l.b16 %v785
    %v818 = vpack.c.b16 %v803, %v802
    %v819 = vpack.c.b16 %v805, %v804
    %v820 = vpack.c.b16 %v807, %v806
    %v821 = vpack.c.b16 %v809, %v808
    %v822 = vpack.c.b16 %v811, %v810
    %v823 = vpack.c.b16 %v813, %v812
    %v824 = vpack.c.b16 %v815, %v814
    %v825 = vpack.c.b16 %v817, %v816
    %834 = vmatprep.subr.bf16.mxu0 0
    %835 = vmatpush1.bf16.msra.mxu0 %v818
    %836 = vmatprep.subr.bf16.mxu0 0
    %837 = vmatpush1.bf16.msra.mxu0 %v819
    %838 = vmatprep.subr.bf16.mxu0 0
    %839 = vmatpush1.bf16.msra.mxu0 %v820
    %840 = vmatprep.subr.bf16.mxu0 0
    %841 = vmatpush1.bf16.msra.mxu0 %v821
    %842 = vmatprep.subr.bf16.mxu0 0
    %843 = vmatpush1.bf16.msra.mxu0 %v822
    %844 = vmatprep.subr.bf16.mxu0 0
    %845 = vmatpush1.bf16.msra.mxu0 %v823
    %846 = vmatprep.subr.bf16.mxu0 0
    %847 = vmatpush1.bf16.msra.mxu0 %v824
    %848 = vmatprep.subr.bf16.mxu0 0
    %849 = vmatpush1.bf16.msra.mxu0 %v825
    %850 = vmatprep.subr.bf16.mxu0 0
    %851 = vmatpush1.bf16.msra.mxu0 0
    %852 = vmatprep.subr.bf16.mxu0 0
    %853 = vmatpush1.bf16.msra.mxu0 0
    %854 = vmatprep.subr.bf16.mxu0 0
    %855 = vmatpush1.bf16.msra.mxu0 0
    %856 = vmatprep.subr.bf16.mxu0 0
    %857 = vmatpush1.bf16.msra.mxu0 0
    %858 = vmatprep.subr.bf16.mxu0 0
    %859 = vmatpush1.bf16.msra.mxu0 0
    %860 = vmatprep.subr.bf16.mxu0 0
    %861 = vmatpush1.bf16.msra.mxu0 0
    %862 = vmatprep.subr.bf16.mxu0 0
    %863 = vmatpush1.bf16.msra.mxu0 0
    %864 = vmatprep.subr.bf16.mxu0 0
    %865 = vmatpush1.bf16.msra.mxu0 0
    %866 = vmatprep.mubr.bf16.mxu0 0
    %867 = vmatmul.mubr.bf16.gmra.mrb[0].mxu0 %v769
    %v868 = vpop.f32.mrb[0].mxu0
    %v869 = vadd.f32 %v761, %v868
    %v870 = vpop.f32.mrb[0].mxu0
    %v871 = vpop.f32.mrb[0].mxu0
    %v872 = vadd.f32 %v761, %v871
    %v873 = vpop.f32.mrb[0].mxu0
    %874 = vdwg.mxu0
    %v875 = vadd.f32 %v759, %v869
    %v876 = vadd.f32 %v760, %v872
    %877 = vadd.xlane.f32.xlu0 %v875
    %v878 = vpop.xlane.xlu0 %877
    %879 = vadd.xlane.f32.xlu0 %v876
    %v880 = vpop.xlane.xlu0 %879
    %v881 = vmul.f32 %v878, %v376
    %v882 = vmul.f32 %v880, %v376
    %v883 = vmul.f32 %v875, %v875
    %v884 = vmul.f32 %v876, %v876
    %885 = vadd.xlane.f32.xlu0 %v883
    %v886 = vpop.xlane.xlu0 %885
    %887 = vadd.xlane.f32.xlu0 %v884
    %v888 = vpop.xlane.xlu0 %887
    %v889 = vmul.f32 %v886, %v376
    %v890 = vmul.f32 %v888, %v376
    %v891 = vmul.f32 %v881, %v881
    %v892 = vmul.f32 %v882, %v882
    %v893 = vsub.f32 %v889, %v891
    %v894 = vsub.f32 %v890, %v892
    %v895 = vsub.f32 %v875, %v881
    %v896 = vsub.f32 %v876, %v882
    %v897 = vadd.f32 %v893, 1e-05
    %v898 = vadd.f32 %v894, 1e-05
    %v899 = vrsqrt.pop %v897
    %v900 = vrsqrt.pop %v898
    %v901 = vmul.f32 %v895, %v899
    %v902 = vmul.f32 %v896, %v900
    %v903 = vmul.f32 %v901, %v762
    %v904 = vmul.f32 %v902, %v762
    %v905 = vadd.f32 %v903, %v763
    %v906 = vadd.f32 %v904, %v763
    %v907 = vpack.c.bf16 %v906, %v905
    %v908 = vld [vmem:[#allocation11] sm:$0xff]
    %v909 = vld [vmem:[#allocation11 + $0x8] sm:$0xff]
    %v910 = vld [vmem:[#allocation11 + $0x10] sm:$0xff]
    %v911 = vld [vmem:[#allocation11 + $0x18] sm:$0xff]
    %v912 = vld [vmem:[#allocation11 + $0x20] sm:$0xff]
    %v913 = vld [vmem:[#allocation11 + $0x28] sm:$0xff]
    %v914 = vld [vmem:[#allocation11 + $0x30] sm:$0xff]
    %v915 = vld [vmem:[#allocation11 + $0x38] sm:$0xff]
    %v916 = vld [vmem:[#allocation11 + $0x40] sm:$0xff]
    %v917 = vld [vmem:[#allocation11 + $0x48] sm:$0xff]
    %v918 = vld [vmem:[#allocation11 + $0x50] sm:$0xff]
    %v919 = vld [vmem:[#allocation11 + $0x58] sm:$0xff]
    %v920 = vld [vmem:[#allocation11 + $0x60] sm:$0xff]
    %v921 = vld [vmem:[#allocation11 + $0x68] sm:$0xff]
    %v922 = vld [vmem:[#allocation11 + $0x70] sm:$0xff]
    %v923 = vld [vmem:[#allocation11 + $0x78] sm:$0xff]
    %v925 = vlaneseq
    %v926 = vshrl.u32 %v925, 7
    %v927 = vsub.s32 0, %v926
    %v928 = vrot.slane %v765, %v927
    %v929 = vlaneseq
    %v930 = vshrl.u32 %v929, 7
    %v931 = vsub.s32 1, %v930
    %v932 = vrot.slane %v765, %v931
    %v951 = vunpack.c.l.b16 %v908
    %v952 = vunpack.c.h.b16 %v908
    %v953 = vunpack.c.l.b16 %v909
    %v954 = vunpack.c.h.b16 %v909
    %v955 = vunpack.c.l.b16 %v910
    %v956 = vunpack.c.h.b16 %v910
    %v957 = vunpack.c.l.b16 %v911
    %v958 = vunpack.c.h.b16 %v911
    %v959 = vunpack.c.l.b16 %v912
    %v960 = vunpack.c.h.b16 %v912
    %v961 = vunpack.c.l.b16 %v913
    %v962 = vunpack.c.h.b16 %v913
    %v963 = vunpack.c.l.b16 %v914
    %v964 = vunpack.c.h.b16 %v914
    %v965 = vunpack.c.l.b16 %v915
    %v966 = vunpack.c.h.b16 %v915
    %v967 = vunpack.c.l.b16 %v916
    %v968 = vunpack.c.h.b16 %v916
    %v969 = vunpack.c.l.b16 %v917
    %v970 = vunpack.c.h.b16 %v917
    %v971 = vunpack.c.l.b16 %v918
    %v972 = vunpack.c.h.b16 %v918
    %v973 = vunpack.c.l.b16 %v919
    %v974 = vunpack.c.h.b16 %v919
    %v975 = vunpack.c.l.b16 %v920
    %v976 = vunpack.c.h.b16 %v920
    %v977 = vunpack.c.l.b16 %v921
    %v978 = vunpack.c.h.b16 %v921
    %v979 = vunpack.c.l.b16 %v922
    %v980 = vunpack.c.h.b16 %v922
    %v981 = vunpack.c.l.b16 %v923
    %v982 = vunpack.c.h.b16 %v923
    %v983 = vpack.c.b16 %v953, %v951
    %v984 = vpack.c.b16 %v954, %v952
    %v985 = vpack.c.b16 %v957, %v955
    %v986 = vpack.c.b16 %v958, %v956
    %v987 = vpack.c.b16 %v961, %v959
    %v988 = vpack.c.b16 %v962, %v960
    %v989 = vpack.c.b16 %v965, %v963
    %v990 = vpack.c.b16 %v966, %v964
    %v991 = vpack.c.b16 %v969, %v967
    %v992 = vpack.c.b16 %v970, %v968
    %v993 = vpack.c.b16 %v973, %v971
    %v994 = vpack.c.b16 %v974, %v972
    %v995 = vpack.c.b16 %v977, %v975
    %v996 = vpack.c.b16 %v978, %v976
    %v997 = vpack.c.b16 %v981, %v979
    %v998 = vpack.c.b16 %v982, %v980
    %1015 = vmatprep.subr.bf16.mxu0 %v984
    %1016 = vmatpush1.bf16.msra.mxu0 %v983
    %1017 = vmatprep.subr.bf16.mxu0 %v986
    %1018 = vmatpush1.bf16.msra.mxu0 %v985
    %1019 = vmatprep.subr.bf16.mxu0 %v988
    %1020 = vmatpush1.bf16.msra.mxu0 %v987
    %1021 = vmatprep.subr.bf16.mxu0 %v990
    %1022 = vmatpush1.bf16.msra.mxu0 %v989
    %1023 = vmatprep.subr.bf16.mxu0 %v992
    %1024 = vmatpush1.bf16.msra.mxu0 %v991
    %1025 = vmatprep.subr.bf16.mxu0 %v994
    %1026 = vmatpush1.bf16.msra.mxu0 %v993
    %1027 = vmatprep.subr.bf16.mxu0 %v996
    %1028 = vmatpush1.bf16.msra.mxu0 %v995
    %1029 = vmatprep.subr.bf16.mxu0 %v998
    %1030 = vmatpush1.bf16.msra.mxu0 %v997
    %1031 = vmatprep.subr.bf16.mxu0 0
    %1032 = vmatpush1.bf16.msra.mxu0 0
    %1033 = vmatprep.subr.bf16.mxu0 0
    %1034 = vmatpush1.bf16.msra.mxu0 0
    %1035 = vmatprep.subr.bf16.mxu0 0
    %1036 = vmatpush1.bf16.msra.mxu0 0
    %1037 = vmatprep.subr.bf16.mxu0 0
    %1038 = vmatpush1.bf16.msra.mxu0 0
    %1039 = vmatprep.subr.bf16.mxu0 0
    %1040 = vmatpush1.bf16.msra.mxu0 0
    %1041 = vmatprep.subr.bf16.mxu0 0
    %1042 = vmatpush1.bf16.msra.mxu0 0
    %1043 = vmatprep.subr.bf16.mxu0 0
    %1044 = vmatpush1.bf16.msra.mxu0 0
    %1045 = vmatprep.subr.bf16.mxu0 0
    %1046 = vmatpush1.bf16.msra.mxu0 0
    %1047 = vmatprep.mubr.bf16.mxu0 0
    %1048 = vmatmul.mubr.bf16.gmra.mrb[0].mxu0 %v907
    %v1049 = vpop.f32.mrb[0].mxu0
    %v1050 = vadd.f32 %v928, %v1049
    %v1051 = vpop.f32.mrb[0].mxu0
    %v1052 = vadd.f32 %v932, %v1051
    %v1053 = vpop.f32.mrb[0].mxu0
    %v1054 = vadd.f32 %v928, %v1053
    %v1055 = vpop.f32.mrb[0].mxu0
    %v1056 = vadd.f32 %v932, %v1055
    %1057 = vdwg.mxu0
    %v1058 = vmax.f32 %v1050, 0.0
    %v1059 = vmax.f32 %v1052, 0.0
    %v1060 = vmax.f32 %v1054, 0.0
    %v1061 = vmax.f32 %v1056, 0.0
    %v1062 = vpack.c.bf16 %v1060, %v1058
    %v1063 = vpack.c.bf16 %v1061, %v1059
    %v1064 = vld [vmem:[#allocation13] sm:$0xf]
    %v1065 = vld [vmem:[#allocation13 + $0x4] sm:$0xf]
    %v1066 = vld [vmem:[#allocation13 + $0x8] sm:$0xf]
    %v1067 = vld [vmem:[#allocation13 + $0xc] sm:$0xf]
    %v1068 = vld [vmem:[#allocation13 + $0x10] sm:$0xf]
    %v1069 = vld [vmem:[#allocation13 + $0x14] sm:$0xf]
    %v1070 = vld [vmem:[#allocation13 + $0x18] sm:$0xf]
    %v1071 = vld [vmem:[#allocation13 + $0x1c] sm:$0xf]
    %v1072 = vld [vmem:[#allocation13 + $0x20] sm:$0xf]
    %v1073 = vld [vmem:[#allocation13 + $0x24] sm:$0xf]
    %v1074 = vld [vmem:[#allocation13 + $0x28] sm:$0xf]
    %v1075 = vld [vmem:[#allocation13 + $0x2c] sm:$0xf]
    %v1076 = vld [vmem:[#allocation13 + $0x30] sm:$0xf]
    %v1077 = vld [vmem:[#allocation13 + $0x34] sm:$0xf]
    %v1078 = vld [vmem:[#allocation13 + $0x38] sm:$0xf]
    %v1079 = vld [vmem:[#allocation13 + $0x3c] sm:$0xf]
    %v1080 = vld [vmem:[#allocation13 + $0x40] sm:$0xf]
    %v1081 = vld [vmem:[#allocation13 + $0x44] sm:$0xf]
    %v1082 = vld [vmem:[#allocation13 + $0x48] sm:$0xf]
    %v1083 = vld [vmem:[#allocation13 + $0x4c] sm:$0xf]
    %v1084 = vld [vmem:[#allocation13 + $0x50] sm:$0xf]
    %v1085 = vld [vmem:[#allocation13 + $0x54] sm:$0xf]
    %v1086 = vld [vmem:[#allocation13 + $0x58] sm:$0xf]
    %v1087 = vld [vmem:[#allocation13 + $0x5c] sm:$0xf]
    %v1088 = vld [vmem:[#allocation13 + $0x60] sm:$0xf]
    %v1089 = vld [vmem:[#allocation13 + $0x64] sm:$0xf]
    %v1090 = vld [vmem:[#allocation13 + $0x68] sm:$0xf]
    %v1091 = vld [vmem:[#allocation13 + $0x6c] sm:$0xf]
    %v1092 = vld [vmem:[#allocation13 + $0x70] sm:$0xf]
    %v1093 = vld [vmem:[#allocation13 + $0x74] sm:$0xf]
    %v1094 = vld [vmem:[#allocation13 + $0x78] sm:$0xf]
    %v1095 = vld [vmem:[#allocation13 + $0x7c] sm:$0xf]
    %v1128 = vunpack.c.l.b16 %v1064
    %v1129 = vunpack.c.l.b16 %v1065
    %v1130 = vunpack.c.l.b16 %v1066
    %v1131 = vunpack.c.l.b16 %v1067
    %v1132 = vunpack.c.l.b16 %v1068
    %v1133 = vunpack.c.l.b16 %v1069
    %v1134 = vunpack.c.l.b16 %v1070
    %v1135 = vunpack.c.l.b16 %v1071
    %v1136 = vunpack.c.l.b16 %v1072
    %v1137 = vunpack.c.l.b16 %v1073
    %v1138 = vunpack.c.l.b16 %v1074
    %v1139 = vunpack.c.l.b16 %v1075
    %v1140 = vunpack.c.l.b16 %v1076
    %v1141 = vunpack.c.l.b16 %v1077
    %v1142 = vunpack.c.l.b16 %v1078
    %v1143 = vunpack.c.l.b16 %v1079
    %v1144 = vunpack.c.l.b16 %v1080
    %v1145 = vunpack.c.l.b16 %v1081
    %v1146 = vunpack.c.l.b16 %v1082
    %v1147 = vunpack.c.l.b16 %v1083
    %v1148 = vunpack.c.l.b16 %v1084
    %v1149 = vunpack.c.l.b16 %v1085
    %v1150 = vunpack.c.l.b16 %v1086
    %v1151 = vunpack.c.l.b16 %v1087
    %v1152 = vunpack.c.l.b16 %v1088
    %v1153 = vunpack.c.l.b16 %v1089
    %v1154 = vunpack.c.l.b16 %v1090
    %v1155 = vunpack.c.l.b16 %v1091
    %v1156 = vunpack.c.l.b16 %v1092
    %v1157 = vunpack.c.l.b16 %v1093
    %v1158 = vunpack.c.l.b16 %v1094
    %v1159 = vunpack.c.l.b16 %v1095
    %v1160 = vpack.c.b16 %v1129, %v1128
    %v1161 = vpack.c.b16 %v1131, %v1130
    %v1162 = vpack.c.b16 %v1133, %v1132
    %v1163 = vpack.c.b16 %v1135, %v1134
    %v1164 = vpack.c.b16 %v1137, %v1136
    %v1165 = vpack.c.b16 %v1139, %v1138
    %v1166 = vpack.c.b16 %v1141, %v1140
    %v1167 = vpack.c.b16 %v1143, %v1142
    %v1168 = vpack.c.b16 %v1145, %v1144
    %v1169 = vpack.c.b16 %v1147, %v1146
    %v1170 = vpack.c.b16 %v1149, %v1148
    %v1171 = vpack.c.b16 %v1151, %v1150
    %v1172 = vpack.c.b16 %v1153, %v1152
    %v1173 = vpack.c.b16 %v1155, %v1154
    %v1174 = vpack.c.b16 %v1157, %v1156
    %v1175 = vpack.c.b16 %v1159, %v1158
    %1192 = vmatprep.subr.bf16.mxu0 0
    %1193 = vmatpush1.bf16.msra.mxu0 %v1160
    %1194 = vmatprep.subr.bf16.mxu0 0
    %1195 = vmatpush1.bf16.msra.mxu0 %v1161
    %1196 = vmatprep.subr.bf16.mxu0 0
    %1197 = vmatpush1.bf16.msra.mxu0 %v1162
    %1198 = vmatprep.subr.bf16.mxu0 0
    %1199 = vmatpush1.bf16.msra.mxu0 %v1163
    %1200 = vmatprep.subr.bf16.mxu0 0
    %1201 = vmatpush1.bf16.msra.mxu0 %v1164
    %1202 = vmatprep.subr.bf16.mxu0 0
    %1203 = vmatpush1.bf16.msra.mxu0 %v1165
    %1204 = vmatprep.subr.bf16.mxu0 0
    %1205 = vmatpush1.bf16.msra.mxu0 %v1166
    %1206 = vmatprep.subr.bf16.mxu0 0
    %1207 = vmatpush1.bf16.msra.mxu0 %v1167
    %1208 = vmatprep.subr.bf16.mxu0 0
    %1209 = vmatpush1.bf16.msra.mxu0 %v1168
    %1210 = vmatprep.subr.bf16.mxu0 0
    %1211 = vmatpush1.bf16.msra.mxu0 %v1169
    %1212 = vmatprep.subr.bf16.mxu0 0
    %1213 = vmatpush1.bf16.msra.mxu0 %v1170
    %1214 = vmatprep.subr.bf16.mxu0 0
    %1215 = vmatpush1.bf16.msra.mxu0 %v1171
    %1216 = vmatprep.subr.bf16.mxu0 0
    %1217 = vmatpush1.bf16.msra.mxu0 %v1172
    %1218 = vmatprep.subr.bf16.mxu0 0
    %1219 = vmatpush1.bf16.msra.mxu0 %v1173
    %1220 = vmatprep.subr.bf16.mxu0 0
    %1221 = vmatpush1.bf16.msra.mxu0 %v1174
    %1222 = vmatprep.subr.bf16.mxu0 0
    %1223 = vmatpush1.bf16.msra.mxu0 %v1175
    %1224 = vmatprep.mubr.bf16.mxu0 %v1063
    %1225 = vmatmul.mubr.bf16.gmra.mrb[0].mxu0 %v1062
    %v1226 = vpop.f32.mrb[0].mxu0
    %v1227 = vadd.f32 %v766, %v1226
    %v1228 = vpop.f32.mrb[0].mxu0
    %v1229 = vpop.f32.mrb[0].mxu0
    %v1230 = vadd.f32 %v766, %v1229
    %v1231 = vpop.f32.mrb[0].mxu0
    %1232 = vdwg.mxu0
    %v1233 = vadd.f32 %v905, %v1227
    %v1234 = vadd.f32 %v906, %v1230
    %1235 = vadd.xlane.f32.xlu0 %v1233
    %v1236 = vpop.xlane.xlu0 %1235
    %1237 = vadd.xlane.f32.xlu0 %v1234
    %v1238 = vpop.xlane.xlu0 %1237
    %v1239 = vmul.f32 %v1236, %v376
    %v1240 = vmul.f32 %v1238, %v376
    %v1241 = vmul.f32 %v1233, %v1233
    %v1242 = vmul.f32 %v1234, %v1234
    %1243 = vadd.xlane.f32.xlu0 %v1241
    %v1244 = vpop.xlane.xlu0 %1243
    %1245 = vadd.xlane.f32.xlu0 %v1242
    %v1246 = vpop.xlane.xlu0 %1245
    %v1247 = vmul.f32 %v1244, %v376
    %v1248 = vmul.f32 %v1246, %v376
    %v1249 = vmul.f32 %v1239, %v1239
    %v1250 = vmul.f32 %v1240, %v1240
    %v1251 = vsub.f32 %v1247, %v1249
    %v1252 = vsub.f32 %v1248, %v1250
    %v1253 = vsub.f32 %v1233, %v1239
    %v1254 = vsub.f32 %v1234, %v1240
    %v1255 = vadd.f32 %v1251, 1e-05
    %v1256 = vadd.f32 %v1252, 1e-05
    %v1257 = vrsqrt.pop %v1255
    %v1258 = vrsqrt.pop %v1256
    %v1259 = vmul.f32 %v1253, %v1257
    %v1260 = vmul.f32 %v1254, %v1258
    %v1261 = vmul.f32 %v1259, %v767
    %v1262 = vmul.f32 %v1260, %v767
    %v1263 = vadd.f32 %v1261, %v768
    %v1264 = vadd.f32 %v1262, %v768
    %1265 = vst [vmem:[#allocation16] sm:$0xff] %v1263
    %1266 = vst [vmem:[#allocation16 + $0x8] sm:$0xff] %v1264
    // Predicated region
    $region78: #{encoder_forward.1} parent=1 // pred_check
      _
    $region79: #{encoder_forward.1} parent=1 // pred_check_branch
      %1268 = sbr.rel (0) target = $region81
    $region80: #{encoder_forward.1} parent=1 // pred_region
      %s1270 = ssub.s32 256, 256
      %1271 = vsyncadd [#allocation4], %s1270
      %s1272 = sshll.u32 [#allocation16], 4
      %s1273 = int_to_ptr.vmem [resolvable:$true] %s1272
      %1278 = dma.vmem_to_hbm [thread:$0]  %s1273, 256, %s11, [#allocation4], 128, 128, 8
    $region81: #{encoder_forward.1} parent=1 // pred_fallthru
      _
    // Predicated region
    $region82: #{encoder_forward.1} parent=1 // pred_check
      _
    $region83: #{encoder_forward.1} parent=1 // pred_check_branch
      %1280 = sbr.rel (0) target = $region85
    $region84: #{encoder_forward.1} parent=1 // pred_region
      %1281 = dma.done [#allocation4], 256
    $region85: #{encoder_forward.1} parent=1 // pred_fallthru
      _
    %1282 = vsyncpa [#allocation3], 1
    %1283 = vsyncpa [#allocation6], 1
    %1284 = vsyncpa [#allocation9], 1
    %1285 = vsyncpa [#allocation12], 1
    %1286 = vsyncpa [#allocation15], 1
    %1287 = vsyncpa [#allocation4], 1

</llo_original>
